<compile_context>
chip_gen: v7x
topology: tpu7x:2x2x1
jax: 0.10.0
libtpu: 0.0.40
codegen_flags: <defaults>
</compile_context>

<pallas_src>
import math

import jax
import jax.numpy as jnp
from jax import lax
from jax.experimental import pallas as pl
from jax.experimental.pallas import tpu as pltpu

# Problem sizes (small, consistent with the module's shapes).
B, N, M, D, H, F = 2, 8, 8, 32, 4, 64   # batch, dec seq, enc seq, hidden, heads, ffn hidden
HD = D // H
EPS = 1e-5
NEG = -1e6                               # d2l masked_softmax fill value


# ---------------- in-kernel helpers (traced inside the Pallas body) -------------

def _layer_norm(x, g, b):
    mu = jnp.mean(x, axis=-1, keepdims=True)
    var = jnp.mean((x - mu) ** 2, axis=-1, keepdims=True)
    return (x - mu) * lax.rsqrt(var + EPS) * g + b


def _softmax(s):
    m = jnp.max(s, axis=-1, keepdims=True)
    e = jnp.exp(s - m)
    # approx reciprocal (EUP slot); row sums accurate to ~1e-3 rel -- within test tol.
    return e * pl.reciprocal(jnp.sum(e, axis=-1, keepdims=True), approx=True)


def _mha(q_in, kv_in, w_ref, off, mask):
    """Multi-head attention for one batch element.

    q_in: (Nq, D) f32, kv_in: (Nk, D) f32, mask: (Nq, Nk) bool.
    w_ref rows [off, off+4D) hold [Wq^T*scale; Wk^T; Wv^T; Wo] in bf16 (packed
    wrapper-side).  Q/K/V are full-width bf16 matmuls; heads are lane slices;
    W_o is distributed per head (acc += head_h @ Wo[:, h]^T) instead of a
    lane-concatenate + single Wo matmul.
    """
    qb = q_in.astype(jnp.bfloat16)
    kvb = kv_in.astype(jnp.bfloat16)
    q = jnp.dot(qb, w_ref[off + 0 * D:off + 1 * D, :], preferred_element_type=jnp.float32)
    k = jnp.dot(kvb, w_ref[off + 1 * D:off + 2 * D, :], preferred_element_type=jnp.float32)
    v = jnp.dot(kvb, w_ref[off + 2 * D:off + 3 * D, :], preferred_element_type=jnp.float32)
    wo = w_ref[off + 3 * D:off + 4 * D, :]               # (D, D) bf16, rows = out dim
    qh = q.astype(jnp.bfloat16)
    kh = k.astype(jnp.bfloat16)
    vh = v.astype(jnp.bfloat16)

    acc = jnp.zeros((q_in.shape[0], D), jnp.float32)
    for h in range(H):
        sl = slice(h * HD, (h + 1) * HD)
        # s = q_h @ k_h.T without materializing a transpose (scale folded into Wq).
        s = lax.dot_general(qh[:, sl], kh[:, sl], (((1,), (1,)), ((), ())),
                            preferred_element_type=jnp.float32)
        p = _softmax(jnp.where(mask, s, NEG))
        head = jnp.dot(p.astype(jnp.bfloat16), vh[:, sl],
                       preferred_element_type=jnp.float32)
        # head_h @ Wo[:, h*HD:(h+1)*HD]^T  (== head_h @ Wo^T rows for this head)
        acc = acc + lax.dot_general(head.astype(jnp.bfloat16), wo[:, sl],
                                    (((1,), (1,)), ((), ())),
                                    preferred_element_type=jnp.float32)
    return acc


# ---------------------------------- kernel --------------------------------------

def decoder_block_kernel(evl_ref, act_ref, wmat_ref, vecs_ref, out_ref):
    # evl_ref : (B,) int32 in SMEM (scalar prefetch)
    # act_ref : (N+M, D) f32  -- this batch's decoder input (rows :N) and encoder
    #                            outputs (rows N:), concatenated wrapper-side.
    # wmat_ref: (8D+2F, D) bf16 packed weight slab
    # vecs_ref: (8, F) f32 [ln1g; ln1b; ln2g; ln2b; ln3g; ln3b; fb2(pad); fb1]
    b = pl.program_id(0)
    x = act_ref[:N, :]                                   # (N, D)
    enc = act_ref[N:, :]                                 # (M, D)

    # --- self-attention: plain causal mask (per-batch block) ---
    qi = lax.broadcasted_iota(jnp.int32, (N, N), 0)
    ki = lax.broadcasted_iota(jnp.int32, (N, N), 1)
    x2 = _mha(x, x, wmat_ref, 0, ki <= qi)
    y = _layer_norm(x + x2, vecs_ref[0:1, :D], vecs_ref[1:2, :D])

    # --- cross-attention: key position < enc_valid_lens[b] (SMEM scalar) ---
    ck = lax.broadcasted_iota(jnp.int32, (N, M), 1)
    y2 = _mha(y, enc, wmat_ref, 4 * D, ck < evl_ref[b])
    z = _layer_norm(y + y2, vecs_ref[2:3, :D], vecs_ref[3:4, :D])

    # --- position-wise FFN (bf16 matmuls, f32 accumulation) ---
    zb = z.astype(jnp.bfloat16)
    h1 = jnp.maximum(
        lax.dot_general(zb, wmat_ref[8 * D:8 * D + F, :], (((1,), (1,)), ((), ())),
                        preferred_element_type=jnp.float32)
        + vecs_ref[7:8, :], 0.0)                          # (N, F)
    ff = (jnp.dot(h1.astype(jnp.bfloat16), wmat_ref[8 * D + F:8 * D + 2 * F, :],
                  preferred_element_type=jnp.float32)
          + vecs_ref[6:7, :D])                            # (N, D)
    out_ref[...] = _layer_norm(z + ff, vecs_ref[4:5, :D], vecs_ref[5:6, :D])


# ---------------------------------- wrapper --------------------------------------

def pack_params(weights):
    """One-time, init-time packing (NOT inside the jitted forward)."""
    (wq1, wk1, wv1, wo1, wq2, wk2, wv2, wo2,
     ln1g, ln1b, ln2g, ln2b, fw1, fb1, fw2, fb2, ln3g, ln3b) = weights
    scale = 1.0 / math.sqrt(HD)
    # (in, out) layout for Q/K/V; Wo kept as (out, in) so per-head splits are lane slices.
    wmat = jnp.concatenate(
        [wq1.T * scale, wk1.T, wv1.T, wo1,
         wq2.T * scale, wk2.T, wv2.T, wo2,
         fw1,            # (F, D): used as z @ fw1^T via dot_general
         fw2.T],         # (F, D)
        axis=0).astype(jnp.bfloat16)                      # (8D + 2F, D)

    def pad_f(r):
        return jnp.pad(r, ((0, 0), (0, F - r.shape[1])))
    vecs = jnp.concatenate(
        [pad_f(ln1g), pad_f(ln1b), pad_f(ln2g), pad_f(ln2b),
         pad_f(ln3g), pad_f(ln3b), pad_f(fb2), fb1],
        axis=0).astype(jnp.float32)                       # (8, F)
    return wmat, vecs


@jax.jit
def decoder_block(x, enc_outputs, enc_valid_lens, wmat, vecs):
    act = jnp.concatenate([x, enc_outputs], axis=1)       # (B, N+M, D), one DMA slab
    evl = jnp.asarray(enc_valid_lens, jnp.int32)          # (B,) scalar prefetch

    grid_spec = pltpu.PrefetchScalarGridSpec(
        num_scalar_prefetch=1,
        grid=(B,),
        in_specs=[
            pl.BlockSpec((None, N + M, D), lambda b, evl: (b, 0, 0)),
            pl.BlockSpec((8 * D + 2 * F, D), lambda b, evl: (0, 0)),
            pl.BlockSpec((8, F), lambda b, evl: (0, 0)),
        ],
        out_specs=pl.BlockSpec((None, N, D), lambda b, evl: (b, 0, 0)),
    )
    return pl.pallas_call(
        decoder_block_kernel,
        out_shape=jax.ShapeDtypeStruct((B, N, D), jnp.float32),
        grid_spec=grid_spec,
        compiler_params=pltpu.CompilerParams(
            dimension_semantics=("parallel",)),           # 2 TCs on v7x; ~free on v5e/v6e
    )(evl, act, wmat, vecs)


# ------------------------------- params & reference ------------------------------

def init_params(key):
    ks = jax.random.split(key, 12)

    def lin(k, out_dim, in_dim):
        return jax.random.normal(k, (out_dim, in_dim), jnp.float32) * 0.1

    wq1, wk1, wv1, wo1 = (lin(ks[i], D, D) for i in range(4))
    wq2, wk2, wv2, wo2 = (lin(ks[i], D, D) for i in range(4, 8))
    fw1 = lin(ks[8], F, D)
    fb1 = jax.random.normal(ks[9], (1, F), jnp.float32) * 0.1
    fw2 = lin(ks[10], D, F)
    fb2 = jax.random.normal(ks[11], (1, D), jnp.float32) * 0.1
    ones, zeros = jnp.ones((1, D), jnp.float32), jnp.zeros((1, D), jnp.float32)
    return [wq1, wk1, wv1, wo1, wq2, wk2, wv2, wo2,
            ones, zeros, ones, zeros,          # ln1, ln2
            fw1, fb1, fw2, fb2,
            ones, zeros]                       # ln3


def reference(x, enc, enc_valid_lens, w):
    (wq1, wk1, wv1, wo1, wq2, wk2, wv2, wo2,
     ln1g, ln1b, ln2g, ln2b, fw1, fb1, fw2, fb2, ln3g, ln3b) = w

    def ln(t, g, b):
        mu = t.mean(-1, keepdims=True)
        var = ((t - mu) ** 2).mean(-1, keepdims=True)
        return (t - mu) / jnp.sqrt(var + EPS) * g + b

    def mha(q_in, kv_in, wq, wk, wv, wo, valid_lens):
        def split(t):
            bb, nn, _ = t.shape
            return t.reshape(bb, nn, H, HD).transpose(0, 2, 1, 3)
        q, k, v = split(q_in @ wq.T), split(kv_in @ wk.T), split(kv_in @ wv.T)
        s = jnp.einsum('bhqd,bhkd->bhqk', q, k) / math.sqrt(HD)
        idx = jnp.arange(kv_in.shape[1])
        if valid_lens.ndim == 1:
            mask = idx[None, None, None, :] < valid_lens[:, None, None, None]
        else:
            mask = idx[None, None, None, :] < valid_lens[:, None, :, None]
        s = jnp.where(mask, s, NEG)
        a = jax.nn.softmax(s, axis=-1)
        o = jnp.einsum('bhqk,bhkd->bhqd', a, v).transpose(0, 2, 1, 3)
        return o.reshape(q_in.shape[0], q_in.shape[1], D) @ wo.T

    dec_valid_lens = jnp.tile(jnp.arange(1, N + 1)[None, :], (B, 1))
    x2 = mha(x, x, wq1, wk1, wv1, wo1, dec_valid_lens)
    y = ln(x + x2, ln1g, ln1b)
    y2 = mha(y, enc, wq2, wk2, wv2, wo2, enc_valid_lens)
    z = ln(y + y2, ln2g, ln2b)
    ff = jnp.maximum(z @ fw1.T + fb1, 0.0) @ fw2.T + fb2
    return ln(z + ff, ln3g, ln3b)


if __name__ == "__main__":
    key = jax.random.PRNGKey(0)
    kx, kenc, kp = jax.random.split(key, 3)

    x = jax.random.normal(kx, (B, N, D), jnp.float32)
    enc_outputs = jax.random.normal(kenc, (B, M, D), jnp.float32)
    enc_valid_lens = jnp.array([M, 5], dtype=jnp.int32)   # per-batch valid encoder length
    weights = init_params(kp)
    wmat, vecs = pack_params(weights)                     # one-time packing at init

    out = decoder_block(x, enc_outputs, enc_valid_lens, wmat, vecs)
    out = jax.block_until_ready(out)

    ref = reference(x, enc_outputs, enc_valid_lens, weights)
    assert out.shape == (B, N, D)
    assert jnp.allclose(out, ref, atol=1e-2, rtol=1e-2), "mismatch vs pure-JAX reference"

    # TODO(synk): dropout > 0 (random mask) and KV-cache concat across decode steps
    # (state[2][i] is not None branch) are stateful/random and are not modeled here.
    print("KERNEL_OK")
</pallas_src>

<mosaic_0001>
module attributes {stable_mosaic.version = 11 : i64} {
  func.func @decoder_block_kernel(%arg0: i32, %arg1: memref<2xi32, #tpu.memory_space<smem>>, %arg2: memref<1x16x32xf32, #tpu.memory_space<vmem>>, %arg3: memref<384x32xbf16, #tpu.memory_space<vmem>>, %arg4: memref<8x64xf32, #tpu.memory_space<vmem>>, %arg5: memref<1x8x32xf32, #tpu.memory_space<vmem>>) attributes {dimension_semantics = [#tpu.dimension_semantics<parallel>], iteration_bounds = array<i64: 2>, scalar_prefetch = 1 : i64, scratch_operands = 0 : i64, tpu.core_type = #tpu.core_type<tc>, window_params = [{transform_indices = @transform_0, window_bounds = array<i64: 1, 16, 32>}, {pipeline_mode = #tpu.pipeline_mode<synchronous>, transform_indices = @transform_1, window_bounds = array<i64: 384, 32>}, {pipeline_mode = #tpu.pipeline_mode<synchronous>, transform_indices = @transform_2, window_bounds = array<i64: 8, 64>}, {transform_indices = @transform_3, window_bounds = array<i64: 1, 8, 32>}]} {
    %c0 = arith.constant 0 : index
    %c0_0 = arith.constant 0 : index
    %c0_1 = arith.constant 0 : index
    %0 = vector.load %arg2[%c0, %c0_0, %c0_1] : memref<1x16x32xf32, #tpu.memory_space<vmem>>, vector<1x8x32xf32>
    %1 = vector.shape_cast %0 : vector<1x8x32xf32> to vector<8x32xf32>
    %c0_2 = arith.constant 0 : index
    %c8 = arith.constant 8 : index
    %c0_3 = arith.constant 0 : index
    %2 = vector.load %arg2[%c0_2, %c8, %c0_3] : memref<1x16x32xf32, #tpu.memory_space<vmem>>, vector<1x8x32xf32>
    %3 = vector.shape_cast %2 : vector<1x8x32xf32> to vector<8x32xf32>
    %4 = tpu.iota {dimensions = array<i32: 0>} : vector<8x8xi32>
    %5 = tpu.iota {dimensions = array<i32: 1>} : vector<8x8xi32>
    %6 = arith.cmpi sle, %5, %4 : vector<8x8xi32>
    %7 = arith.truncf %1 : vector<8x32xf32> to vector<8x32xbf16>
    %8 = arith.truncf %1 : vector<8x32xf32> to vector<8x32xbf16>
    %c0_4 = arith.constant 0 : index
    %c0_5 = arith.constant 0 : index
    %9 = vector.load %arg3[%c0_4, %c0_5] : memref<384x32xbf16, #tpu.memory_space<vmem>>, vector<32x32xbf16>
    %cst = arith.constant dense<0.000000e+00> : vector<8x32xf32>
    %10 = tpu.matmul %7, %9, %cst {dimension_numbers = #tpu.dot_dimension_numbers<[1], [0], [0], [1], [0, 0, 1, 1], [], []>} : vector<8x32xbf16>, vector<32x32xbf16>, vector<8x32xf32> -> vector<8x32xf32>
    %c32 = arith.constant 32 : index
    %c0_6 = arith.constant 0 : index
    %11 = vector.load %arg3[%c32, %c0_6] : memref<384x32xbf16, #tpu.memory_space<vmem>>, vector<32x32xbf16>
    %cst_7 = arith.constant dense<0.000000e+00> : vector<8x32xf32>
    %12 = tpu.matmul %8, %11, %cst_7 {dimension_numbers = #tpu.dot_dimension_numbers<[1], [0], [0], [1], [0, 0, 1, 1], [], []>} : vector<8x32xbf16>, vector<32x32xbf16>, vector<8x32xf32> -> vector<8x32xf32>
    %c64 = arith.constant 64 : index
    %c0_8 = arith.constant 0 : index
    %13 = vector.load %arg3[%c64, %c0_8] : memref<384x32xbf16, #tpu.memory_space<vmem>>, vector<32x32xbf16>
    %cst_9 = arith.constant dense<0.000000e+00> : vector<8x32xf32>
    %14 = tpu.matmul %8, %13, %cst_9 {dimension_numbers = #tpu.dot_dimension_numbers<[1], [0], [0], [1], [0, 0, 1, 1], [], []>} : vector<8x32xbf16>, vector<32x32xbf16>, vector<8x32xf32> -> vector<8x32xf32>
    %c96 = arith.constant 96 : index
    %c0_10 = arith.constant 0 : index
    %15 = vector.load %arg3[%c96, %c0_10] : memref<384x32xbf16, #tpu.memory_space<vmem>>, vector<32x32xbf16>
    %16 = arith.truncf %10 : vector<8x32xf32> to vector<8x32xbf16>
    %17 = arith.truncf %12 : vector<8x32xf32> to vector<8x32xbf16>
    %18 = arith.truncf %14 : vector<8x32xf32> to vector<8x32xbf16>
    %cst_11 = arith.constant 0.000000e+00 : f32
    %19 = vector.broadcast %cst_11 : f32 to vector<8x32xf32>
    %20 = vector.extract_strided_slice %16 {offsets = [0, 0], sizes = [8, 8], strides = [1, 1]} : vector<8x32xbf16> to vector<8x8xbf16>
    %21 = vector.extract_strided_slice %17 {offsets = [0, 0], sizes = [8, 8], strides = [1, 1]} : vector<8x32xbf16> to vector<8x8xbf16>
    %cst_12 = arith.constant dense<0.000000e+00> : vector<8x8xf32>
    %22 = tpu.matmul %20, %21, %cst_12 {dimension_numbers = #tpu.dot_dimension_numbers<[1], [1], [0], [0], [0, 0, 1, 0], [], []>} : vector<8x8xbf16>, vector<8x8xbf16>, vector<8x8xf32> -> vector<8x8xf32>
    %cst_13 = arith.constant -1.000000e+06 : f32
    %23 = vector.broadcast %cst_13 : f32 to vector<8x8xf32>
    %24 = arith.select %6, %22, %23 : vector<8x8xi1>, vector<8x8xf32>
    %cst_14 = arith.constant dense<0xFF800000> : vector<8xf32>
    %25 = vector.multi_reduction <maximumf>, %24, %cst_14 [1] : vector<8x8xf32> to vector<8xf32>
    %26 = vector.shape_cast %25 : vector<8xf32> to vector<8x1xf32>
    %27 = vector.broadcast %26 : vector<8x1xf32> to vector<8x8xf32>
    %28 = arith.subf %24, %27 : vector<8x8xf32>
    %29 = math.exp %28 : vector<8x8xf32>
    %cst_15 = arith.constant dense<0.000000e+00> : vector<8xf32>
    %30 = vector.multi_reduction <add>, %29, %cst_15 [1] : vector<8x8xf32> to vector<8xf32>
    %31 = vector.shape_cast %30 : vector<8xf32> to vector<8x1xf32>
    %32 = tpu.reciprocal %31 {approx = true} : vector<8x1xf32> -> vector<8x1xf32>
    %33 = vector.broadcast %32 : vector<8x1xf32> to vector<8x8xf32>
    %34 = arith.mulf %29, %33 : vector<8x8xf32>
    %35 = arith.truncf %34 : vector<8x8xf32> to vector<8x8xbf16>
    %36 = vector.extract_strided_slice %18 {offsets = [0, 0], sizes = [8, 8], strides = [1, 1]} : vector<8x32xbf16> to vector<8x8xbf16>
    %cst_16 = arith.constant dense<0.000000e+00> : vector<8x8xf32>
    %37 = tpu.matmul %35, %36, %cst_16 {dimension_numbers = #tpu.dot_dimension_numbers<[1], [0], [0], [1], [0, 0, 1, 1], [], []>} : vector<8x8xbf16>, vector<8x8xbf16>, vector<8x8xf32> -> vector<8x8xf32>
    %38 = arith.truncf %37 : vector<8x8xf32> to vector<8x8xbf16>
    %39 = vector.extract_strided_slice %15 {offsets = [0, 0], sizes = [32, 8], strides = [1, 1]} : vector<32x32xbf16> to vector<32x8xbf16>
    %cst_17 = arith.constant dense<0.000000e+00> : vector<8x32xf32>
    %40 = tpu.matmul %38, %39, %cst_17 {dimension_numbers = #tpu.dot_dimension_numbers<[1], [1], [0], [0], [0, 0, 1, 0], [], []>} : vector<8x8xbf16>, vector<32x8xbf16>, vector<8x32xf32> -> vector<8x32xf32>
    %41 = arith.addf %19, %40 : vector<8x32xf32>
    %42 = vector.extract_strided_slice %16 {offsets = [0, 8], sizes = [8, 8], strides = [1, 1]} : vector<8x32xbf16> to vector<8x8xbf16>
    %43 = vector.extract_strided_slice %17 {offsets = [0, 8], sizes = [8, 8], strides = [1, 1]} : vector<8x32xbf16> to vector<8x8xbf16>
    %cst_18 = arith.constant dense<0.000000e+00> : vector<8x8xf32>
    %44 = tpu.matmul %42, %43, %cst_18 {dimension_numbers = #tpu.dot_dimension_numbers<[1], [1], [0], [0], [0, 0, 1, 0], [], []>} : vector<8x8xbf16>, vector<8x8xbf16>, vector<8x8xf32> -> vector<8x8xf32>
    %cst_19 = arith.constant -1.000000e+06 : f32
    %45 = vector.broadcast %cst_19 : f32 to vector<8x8xf32>
    %46 = arith.select %6, %44, %45 : vector<8x8xi1>, vector<8x8xf32>
    %cst_20 = arith.constant dense<0xFF800000> : vector<8xf32>
    %47 = vector.multi_reduction <maximumf>, %46, %cst_20 [1] : vector<8x8xf32> to vector<8xf32>
    %48 = vector.shape_cast %47 : vector<8xf32> to vector<8x1xf32>
    %49 = vector.broadcast %48 : vector<8x1xf32> to vector<8x8xf32>
    %50 = arith.subf %46, %49 : vector<8x8xf32>
    %51 = math.exp %50 : vector<8x8xf32>
    %cst_21 = arith.constant dense<0.000000e+00> : vector<8xf32>
    %52 = vector.multi_reduction <add>, %51, %cst_21 [1] : vector<8x8xf32> to vector<8xf32>
    %53 = vector.shape_cast %52 : vector<8xf32> to vector<8x1xf32>
    %54 = tpu.reciprocal %53 {approx = true} : vector<8x1xf32> -> vector<8x1xf32>
    %55 = vector.broadcast %54 : vector<8x1xf32> to vector<8x8xf32>
    %56 = arith.mulf %51, %55 : vector<8x8xf32>
    %57 = arith.truncf %56 : vector<8x8xf32> to vector<8x8xbf16>
    %58 = vector.extract_strided_slice %18 {offsets = [0, 8], sizes = [8, 8], strides = [1, 1]} : vector<8x32xbf16> to vector<8x8xbf16>
    %cst_22 = arith.constant dense<0.000000e+00> : vector<8x8xf32>
    %59 = tpu.matmul %57, %58, %cst_22 {dimension_numbers = #tpu.dot_dimension_numbers<[1], [0], [0], [1], [0, 0, 1, 1], [], []>} : vector<8x8xbf16>, vector<8x8xbf16>, vector<8x8xf32> -> vector<8x8xf32>
    %60 = arith.truncf %59 : vector<8x8xf32> to vector<8x8xbf16>
    %61 = vector.extract_strided_slice %15 {offsets = [0, 8], sizes = [32, 8], strides = [1, 1]} : vector<32x32xbf16> to vector<32x8xbf16>
    %cst_23 = arith.constant dense<0.000000e+00> : vector<8x32xf32>
    %62 = tpu.matmul %60, %61, %cst_23 {dimension_numbers = #tpu.dot_dimension_numbers<[1], [1], [0], [0], [0, 0, 1, 0], [], []>} : vector<8x8xbf16>, vector<32x8xbf16>, vector<8x32xf32> -> vector<8x32xf32>
    %63 = arith.addf %41, %62 : vector<8x32xf32>
    %64 = vector.extract_strided_slice %16 {offsets = [0, 16], sizes = [8, 8], strides = [1, 1]} : vector<8x32xbf16> to vector<8x8xbf16>
    %65 = vector.extract_strided_slice %17 {offsets = [0, 16], sizes = [8, 8], strides = [1, 1]} : vector<8x32xbf16> to vector<8x8xbf16>
    %cst_24 = arith.constant dense<0.000000e+00> : vector<8x8xf32>
    %66 = tpu.matmul %64, %65, %cst_24 {dimension_numbers = #tpu.dot_dimension_numbers<[1], [1], [0], [0], [0, 0, 1, 0], [], []>} : vector<8x8xbf16>, vector<8x8xbf16>, vector<8x8xf32> -> vector<8x8xf32>
    %cst_25 = arith.constant -1.000000e+06 : f32
    %67 = vector.broadcast %cst_25 : f32 to vector<8x8xf32>
    %68 = arith.select %6, %66, %67 : vector<8x8xi1>, vector<8x8xf32>
    %cst_26 = arith.constant dense<0xFF800000> : vector<8xf32>
    %69 = vector.multi_reduction <maximumf>, %68, %cst_26 [1] : vector<8x8xf32> to vector<8xf32>
    %70 = vector.shape_cast %69 : vector<8xf32> to vector<8x1xf32>
    %71 = vector.broadcast %70 : vector<8x1xf32> to vector<8x8xf32>
    %72 = arith.subf %68, %71 : vector<8x8xf32>
    %73 = math.exp %72 : vector<8x8xf32>
    %cst_27 = arith.constant dense<0.000000e+00> : vector<8xf32>
    %74 = vector.multi_reduction <add>, %73, %cst_27 [1] : vector<8x8xf32> to vector<8xf32>
    %75 = vector.shape_cast %74 : vector<8xf32> to vector<8x1xf32>
    %76 = tpu.reciprocal %75 {approx = true} : vector<8x1xf32> -> vector<8x1xf32>
    %77 = vector.broadcast %76 : vector<8x1xf32> to vector<8x8xf32>
    %78 = arith.mulf %73, %77 : vector<8x8xf32>
    %79 = arith.truncf %78 : vector<8x8xf32> to vector<8x8xbf16>
    %80 = vector.extract_strided_slice %18 {offsets = [0, 16], sizes = [8, 8], strides = [1, 1]} : vector<8x32xbf16> to vector<8x8xbf16>
    %cst_28 = arith.constant dense<0.000000e+00> : vector<8x8xf32>
    %81 = tpu.matmul %79, %80, %cst_28 {dimension_numbers = #tpu.dot_dimension_numbers<[1], [0], [0], [1], [0, 0, 1, 1], [], []>} : vector<8x8xbf16>, vector<8x8xbf16>, vector<8x8xf32> -> vector<8x8xf32>
    %82 = arith.truncf %81 : vector<8x8xf32> to vector<8x8xbf16>
    %83 = vector.extract_strided_slice %15 {offsets = [0, 16], sizes = [32, 8], strides = [1, 1]} : vector<32x32xbf16> to vector<32x8xbf16>
    %cst_29 = arith.constant dense<0.000000e+00> : vector<8x32xf32>
    %84 = tpu.matmul %82, %83, %cst_29 {dimension_numbers = #tpu.dot_dimension_numbers<[1], [1], [0], [0], [0, 0, 1, 0], [], []>} : vector<8x8xbf16>, vector<32x8xbf16>, vector<8x32xf32> -> vector<8x32xf32>
    %85 = arith.addf %63, %84 : vector<8x32xf32>
    %86 = vector.extract_strided_slice %16 {offsets = [0, 24], sizes = [8, 8], strides = [1, 1]} : vector<8x32xbf16> to vector<8x8xbf16>
    %87 = vector.extract_strided_slice %17 {offsets = [0, 24], sizes = [8, 8], strides = [1, 1]} : vector<8x32xbf16> to vector<8x8xbf16>
    %cst_30 = arith.constant dense<0.000000e+00> : vector<8x8xf32>
    %88 = tpu.matmul %86, %87, %cst_30 {dimension_numbers = #tpu.dot_dimension_numbers<[1], [1], [0], [0], [0, 0, 1, 0], [], []>} : vector<8x8xbf16>, vector<8x8xbf16>, vector<8x8xf32> -> vector<8x8xf32>
    %cst_31 = arith.constant -1.000000e+06 : f32
    %89 = vector.broadcast %cst_31 : f32 to vector<8x8xf32>
    %90 = arith.select %6, %88, %89 : vector<8x8xi1>, vector<8x8xf32>
    %cst_32 = arith.constant dense<0xFF800000> : vector<8xf32>
    %91 = vector.multi_reduction <maximumf>, %90, %cst_32 [1] : vector<8x8xf32> to vector<8xf32>
    %92 = vector.shape_cast %91 : vector<8xf32> to vector<8x1xf32>
    %93 = vector.broadcast %92 : vector<8x1xf32> to vector<8x8xf32>
    %94 = arith.subf %90, %93 : vector<8x8xf32>
    %95 = math.exp %94 : vector<8x8xf32>
    %cst_33 = arith.constant dense<0.000000e+00> : vector<8xf32>
    %96 = vector.multi_reduction <add>, %95, %cst_33 [1] : vector<8x8xf32> to vector<8xf32>
    %97 = vector.shape_cast %96 : vector<8xf32> to vector<8x1xf32>
    %98 = tpu.reciprocal %97 {approx = true} : vector<8x1xf32> -> vector<8x1xf32>
    %99 = vector.broadcast %98 : vector<8x1xf32> to vector<8x8xf32>
    %100 = arith.mulf %95, %99 : vector<8x8xf32>
    %101 = arith.truncf %100 : vector<8x8xf32> to vector<8x8xbf16>
    %102 = vector.extract_strided_slice %18 {offsets = [0, 24], sizes = [8, 8], strides = [1, 1]} : vector<8x32xbf16> to vector<8x8xbf16>
    %cst_34 = arith.constant dense<0.000000e+00> : vector<8x8xf32>
    %103 = tpu.matmul %101, %102, %cst_34 {dimension_numbers = #tpu.dot_dimension_numbers<[1], [0], [0], [1], [0, 0, 1, 1], [], []>} : vector<8x8xbf16>, vector<8x8xbf16>, vector<8x8xf32> -> vector<8x8xf32>
    %104 = arith.truncf %103 : vector<8x8xf32> to vector<8x8xbf16>
    %105 = vector.extract_strided_slice %15 {offsets = [0, 24], sizes = [32, 8], strides = [1, 1]} : vector<32x32xbf16> to vector<32x8xbf16>
    %cst_35 = arith.constant dense<0.000000e+00> : vector<8x32xf32>
    %106 = tpu.matmul %104, %105, %cst_35 {dimension_numbers = #tpu.dot_dimension_numbers<[1], [1], [0], [0], [0, 0, 1, 0], [], []>} : vector<8x8xbf16>, vector<32x8xbf16>, vector<8x32xf32> -> vector<8x32xf32>
    %107 = arith.addf %85, %106 : vector<8x32xf32>
    %108 = arith.addf %1, %107 : vector<8x32xf32>
    %c0_36 = arith.constant 0 : index
    %c0_37 = arith.constant 0 : index
    %109 = vector.load %arg4[%c0_36, %c0_37] : memref<8x64xf32, #tpu.memory_space<vmem>>, vector<1x32xf32>
    %c1 = arith.constant 1 : index
    %c0_38 = arith.constant 0 : index
    %110 = vector.load %arg4[%c1, %c0_38] : memref<8x64xf32, #tpu.memory_space<vmem>>, vector<1x32xf32>
    %cst_39 = arith.constant dense<0.000000e+00> : vector<8xf32>
    %111 = vector.multi_reduction <add>, %108, %cst_39 [1] : vector<8x32xf32> to vector<8xf32>
    %112 = vector.shape_cast %111 : vector<8xf32> to vector<8x1xf32>
    %cst_40 = arith.constant 3.200000e+01 : f32
    %113 = vector.broadcast %cst_40 : f32 to vector<8x1xf32>
    %114 = arith.divf %112, %113 : vector<8x1xf32>
    %115 = vector.broadcast %114 : vector<8x1xf32> to vector<8x32xf32>
    %116 = arith.subf %108, %115 : vector<8x32xf32>
    %117 = arith.mulf %116, %116 : vector<8x32xf32>
    %cst_41 = arith.constant dense<0.000000e+00> : vector<8xf32>
    %118 = vector.multi_reduction <add>, %117, %cst_41 [1] : vector<8x32xf32> to vector<8xf32>
    %119 = vector.shape_cast %118 : vector<8xf32> to vector<8x1xf32>
    %cst_42 = arith.constant 3.200000e+01 : f32
    %120 = vector.broadcast %cst_42 : f32 to vector<8x1xf32>
    %121 = arith.divf %119, %120 : vector<8x1xf32>
    %122 = vector.broadcast %114 : vector<8x1xf32> to vector<8x32xf32>
    %123 = arith.subf %108, %122 : vector<8x32xf32>
    %cst_43 = arith.constant 9.99999974E-6 : f32
    %124 = vector.broadcast %cst_43 : f32 to vector<8x1xf32>
    %125 = arith.addf %121, %124 : vector<8x1xf32>
    %126 = math.rsqrt %125 : vector<8x1xf32>
    %127 = vector.broadcast %126 : vector<8x1xf32> to vector<8x32xf32>
    %128 = arith.mulf %123, %127 : vector<8x32xf32>
    %129 = vector.broadcast %109 : vector<1x32xf32> to vector<8x32xf32>
    %130 = arith.mulf %128, %129 : vector<8x32xf32>
    %131 = vector.broadcast %110 : vector<1x32xf32> to vector<8x32xf32>
    %132 = arith.addf %130, %131 : vector<8x32xf32>
    %133 = tpu.iota {dimensions = array<i32: 1>} : vector<8x8xi32>
    %134 = arith.index_cast %arg0 : i32 to index
    %135 = memref.load %arg1[%134] : memref<2xi32, #tpu.memory_space<smem>>
    %136 = vector.broadcast %135 : i32 to vector<8x8xi32>
    %137 = arith.cmpi slt, %133, %136 : vector<8x8xi32>
    %138 = arith.truncf %132 : vector<8x32xf32> to vector<8x32xbf16>
    %139 = arith.truncf %3 : vector<8x32xf32> to vector<8x32xbf16>
    %c128 = arith.constant 128 : index
    %c0_44 = arith.constant 0 : index
    %140 = vector.load %arg3[%c128, %c0_44] : memref<384x32xbf16, #tpu.memory_space<vmem>>, vector<32x32xbf16>
    %cst_45 = arith.constant dense<0.000000e+00> : vector<8x32xf32>
    %141 = tpu.matmul %138, %140, %cst_45 {dimension_numbers = #tpu.dot_dimension_numbers<[1], [0], [0], [1], [0, 0, 1, 1], [], []>} : vector<8x32xbf16>, vector<32x32xbf16>, vector<8x32xf32> -> vector<8x32xf32>
    %c160 = arith.constant 160 : index
    %c0_46 = arith.constant 0 : index
    %142 = vector.load %arg3[%c160, %c0_46] : memref<384x32xbf16, #tpu.memory_space<vmem>>, vector<32x32xbf16>
    %cst_47 = arith.constant dense<0.000000e+00> : vector<8x32xf32>
    %143 = tpu.matmul %139, %142, %cst_47 {dimension_numbers = #tpu.dot_dimension_numbers<[1], [0], [0], [1], [0, 0, 1, 1], [], []>} : vector<8x32xbf16>, vector<32x32xbf16>, vector<8x32xf32> -> vector<8x32xf32>
    %c192 = arith.constant 192 : index
    %c0_48 = arith.constant 0 : index
    %144 = vector.load %arg3[%c192, %c0_48] : memref<384x32xbf16, #tpu.memory_space<vmem>>, vector<32x32xbf16>
    %cst_49 = arith.constant dense<0.000000e+00> : vector<8x32xf32>
    %145 = tpu.matmul %139, %144, %cst_49 {dimension_numbers = #tpu.dot_dimension_numbers<[1], [0], [0], [1], [0, 0, 1, 1], [], []>} : vector<8x32xbf16>, vector<32x32xbf16>, vector<8x32xf32> -> vector<8x32xf32>
    %c224 = arith.constant 224 : index
    %c0_50 = arith.constant 0 : index
    %146 = vector.load %arg3[%c224, %c0_50] : memref<384x32xbf16, #tpu.memory_space<vmem>>, vector<32x32xbf16>
    %147 = arith.truncf %141 : vector<8x32xf32> to vector<8x32xbf16>
    %148 = arith.truncf %143 : vector<8x32xf32> to vector<8x32xbf16>
    %149 = arith.truncf %145 : vector<8x32xf32> to vector<8x32xbf16>
    %cst_51 = arith.constant 0.000000e+00 : f32
    %150 = vector.broadcast %cst_51 : f32 to vector<8x32xf32>
    %151 = vector.extract_strided_slice %147 {offsets = [0, 0], sizes = [8, 8], strides = [1, 1]} : vector<8x32xbf16> to vector<8x8xbf16>
    %152 = vector.extract_strided_slice %148 {offsets = [0, 0], sizes = [8, 8], strides = [1, 1]} : vector<8x32xbf16> to vector<8x8xbf16>
    %cst_52 = arith.constant dense<0.000000e+00> : vector<8x8xf32>
    %153 = tpu.matmul %151, %152, %cst_52 {dimension_numbers = #tpu.dot_dimension_numbers<[1], [1], [0], [0], [0, 0, 1, 0], [], []>} : vector<8x8xbf16>, vector<8x8xbf16>, vector<8x8xf32> -> vector<8x8xf32>
    %cst_53 = arith.constant -1.000000e+06 : f32
    %154 = vector.broadcast %cst_53 : f32 to vector<8x8xf32>
    %155 = arith.select %137, %153, %154 : vector<8x8xi1>, vector<8x8xf32>
    %cst_54 = arith.constant dense<0xFF800000> : vector<8xf32>
    %156 = vector.multi_reduction <maximumf>, %155, %cst_54 [1] : vector<8x8xf32> to vector<8xf32>
    %157 = vector.shape_cast %156 : vector<8xf32> to vector<8x1xf32>
    %158 = vector.broadcast %157 : vector<8x1xf32> to vector<8x8xf32>
    %159 = arith.subf %155, %158 : vector<8x8xf32>
    %160 = math.exp %159 : vector<8x8xf32>
    %cst_55 = arith.constant dense<0.000000e+00> : vector<8xf32>
    %161 = vector.multi_reduction <add>, %160, %cst_55 [1] : vector<8x8xf32> to vector<8xf32>
    %162 = vector.shape_cast %161 : vector<8xf32> to vector<8x1xf32>
    %163 = tpu.reciprocal %162 {approx = true} : vector<8x1xf32> -> vector<8x1xf32>
    %164 = vector.broadcast %163 : vector<8x1xf32> to vector<8x8xf32>
    %165 = arith.mulf %160, %164 : vector<8x8xf32>
    %166 = arith.truncf %165 : vector<8x8xf32> to vector<8x8xbf16>
    %167 = vector.extract_strided_slice %149 {offsets = [0, 0], sizes = [8, 8], strides = [1, 1]} : vector<8x32xbf16> to vector<8x8xbf16>
    %cst_56 = arith.constant dense<0.000000e+00> : vector<8x8xf32>
    %168 = tpu.matmul %166, %167, %cst_56 {dimension_numbers = #tpu.dot_dimension_numbers<[1], [0], [0], [1], [0, 0, 1, 1], [], []>} : vector<8x8xbf16>, vector<8x8xbf16>, vector<8x8xf32> -> vector<8x8xf32>
    %169 = arith.truncf %168 : vector<8x8xf32> to vector<8x8xbf16>
    %170 = vector.extract_strided_slice %146 {offsets = [0, 0], sizes = [32, 8], strides = [1, 1]} : vector<32x32xbf16> to vector<32x8xbf16>
    %cst_57 = arith.constant dense<0.000000e+00> : vector<8x32xf32>
    %171 = tpu.matmul %169, %170, %cst_57 {dimension_numbers = #tpu.dot_dimension_numbers<[1], [1], [0], [0], [0, 0, 1, 0], [], []>} : vector<8x8xbf16>, vector<32x8xbf16>, vector<8x32xf32> -> vector<8x32xf32>
    %172 = arith.addf %150, %171 : vector<8x32xf32>
    %173 = vector.extract_strided_slice %147 {offsets = [0, 8], sizes = [8, 8], strides = [1, 1]} : vector<8x32xbf16> to vector<8x8xbf16>
    %174 = vector.extract_strided_slice %148 {offsets = [0, 8], sizes = [8, 8], strides = [1, 1]} : vector<8x32xbf16> to vector<8x8xbf16>
    %cst_58 = arith.constant dense<0.000000e+00> : vector<8x8xf32>
    %175 = tpu.matmul %173, %174, %cst_58 {dimension_numbers = #tpu.dot_dimension_numbers<[1], [1], [0], [0], [0, 0, 1, 0], [], []>} : vector<8x8xbf16>, vector<8x8xbf16>, vector<8x8xf32> -> vector<8x8xf32>
    %cst_59 = arith.constant -1.000000e+06 : f32
    %176 = vector.broadcast %cst_59 : f32 to vector<8x8xf32>
    %177 = arith.select %137, %175, %176 : vector<8x8xi1>, vector<8x8xf32>
    %cst_60 = arith.constant dense<0xFF800000> : vector<8xf32>
    %178 = vector.multi_reduction <maximumf>, %177, %cst_60 [1] : vector<8x8xf32> to vector<8xf32>
    %179 = vector.shape_cast %178 : vector<8xf32> to vector<8x1xf32>
    %180 = vector.broadcast %179 : vector<8x1xf32> to vector<8x8xf32>
    %181 = arith.subf %177, %180 : vector<8x8xf32>
    %182 = math.exp %181 : vector<8x8xf32>
    %cst_61 = arith.constant dense<0.000000e+00> : vector<8xf32>
    %183 = vector.multi_reduction <add>, %182, %cst_61 [1] : vector<8x8xf32> to vector<8xf32>
    %184 = vector.shape_cast %183 : vector<8xf32> to vector<8x1xf32>
    %185 = tpu.reciprocal %184 {approx = true} : vector<8x1xf32> -> vector<8x1xf32>
    %186 = vector.broadcast %185 : vector<8x1xf32> to vector<8x8xf32>
    %187 = arith.mulf %182, %186 : vector<8x8xf32>
    %188 = arith.truncf %187 : vector<8x8xf32> to vector<8x8xbf16>
    %189 = vector.extract_strided_slice %149 {offsets = [0, 8], sizes = [8, 8], strides = [1, 1]} : vector<8x32xbf16> to vector<8x8xbf16>
    %cst_62 = arith.constant dense<0.000000e+00> : vector<8x8xf32>
    %190 = tpu.matmul %188, %189, %cst_62 {dimension_numbers = #tpu.dot_dimension_numbers<[1], [0], [0], [1], [0, 0, 1, 1], [], []>} : vector<8x8xbf16>, vector<8x8xbf16>, vector<8x8xf32> -> vector<8x8xf32>
    %191 = arith.truncf %190 : vector<8x8xf32> to vector<8x8xbf16>
    %192 = vector.extract_strided_slice %146 {offsets = [0, 8], sizes = [32, 8], strides = [1, 1]} : vector<32x32xbf16> to vector<32x8xbf16>
    %cst_63 = arith.constant dense<0.000000e+00> : vector<8x32xf32>
    %193 = tpu.matmul %191, %192, %cst_63 {dimension_numbers = #tpu.dot_dimension_numbers<[1], [1], [0], [0], [0, 0, 1, 0], [], []>} : vector<8x8xbf16>, vector<32x8xbf16>, vector<8x32xf32> -> vector<8x32xf32>
    %194 = arith.addf %172, %193 : vector<8x32xf32>
    %195 = vector.extract_strided_slice %147 {offsets = [0, 16], sizes = [8, 8], strides = [1, 1]} : vector<8x32xbf16> to vector<8x8xbf16>
    %196 = vector.extract_strided_slice %148 {offsets = [0, 16], sizes = [8, 8], strides = [1, 1]} : vector<8x32xbf16> to vector<8x8xbf16>
    %cst_64 = arith.constant dense<0.000000e+00> : vector<8x8xf32>
    %197 = tpu.matmul %195, %196, %cst_64 {dimension_numbers = #tpu.dot_dimension_numbers<[1], [1], [0], [0], [0, 0, 1, 0], [], []>} : vector<8x8xbf16>, vector<8x8xbf16>, vector<8x8xf32> -> vector<8x8xf32>
    %cst_65 = arith.constant -1.000000e+06 : f32
    %198 = vector.broadcast %cst_65 : f32 to vector<8x8xf32>
    %199 = arith.select %137, %197, %198 : vector<8x8xi1>, vector<8x8xf32>
    %cst_66 = arith.constant dense<0xFF800000> : vector<8xf32>
    %200 = vector.multi_reduction <maximumf>, %199, %cst_66 [1] : vector<8x8xf32> to vector<8xf32>
    %201 = vector.shape_cast %200 : vector<8xf32> to vector<8x1xf32>
    %202 = vector.broadcast %201 : vector<8x1xf32> to vector<8x8xf32>
    %203 = arith.subf %199, %202 : vector<8x8xf32>
    %204 = math.exp %203 : vector<8x8xf32>
    %cst_67 = arith.constant dense<0.000000e+00> : vector<8xf32>
    %205 = vector.multi_reduction <add>, %204, %cst_67 [1] : vector<8x8xf32> to vector<8xf32>
    %206 = vector.shape_cast %205 : vector<8xf32> to vector<8x1xf32>
    %207 = tpu.reciprocal %206 {approx = true} : vector<8x1xf32> -> vector<8x1xf32>
    %208 = vector.broadcast %207 : vector<8x1xf32> to vector<8x8xf32>
    %209 = arith.mulf %204, %208 : vector<8x8xf32>
    %210 = arith.truncf %209 : vector<8x8xf32> to vector<8x8xbf16>
    %211 = vector.extract_strided_slice %149 {offsets = [0, 16], sizes = [8, 8], strides = [1, 1]} : vector<8x32xbf16> to vector<8x8xbf16>
    %cst_68 = arith.constant dense<0.000000e+00> : vector<8x8xf32>
    %212 = tpu.matmul %210, %211, %cst_68 {dimension_numbers = #tpu.dot_dimension_numbers<[1], [0], [0], [1], [0, 0, 1, 1], [], []>} : vector<8x8xbf16>, vector<8x8xbf16>, vector<8x8xf32> -> vector<8x8xf32>
    %213 = arith.truncf %212 : vector<8x8xf32> to vector<8x8xbf16>
    %214 = vector.extract_strided_slice %146 {offsets = [0, 16], sizes = [32, 8], strides = [1, 1]} : vector<32x32xbf16> to vector<32x8xbf16>
    %cst_69 = arith.constant dense<0.000000e+00> : vector<8x32xf32>
    %215 = tpu.matmul %213, %214, %cst_69 {dimension_numbers = #tpu.dot_dimension_numbers<[1], [1], [0], [0], [0, 0, 1, 0], [], []>} : vector<8x8xbf16>, vector<32x8xbf16>, vector<8x32xf32> -> vector<8x32xf32>
    %216 = arith.addf %194, %215 : vector<8x32xf32>
    %217 = vector.extract_strided_slice %147 {offsets = [0, 24], sizes = [8, 8], strides = [1, 1]} : vector<8x32xbf16> to vector<8x8xbf16>
    %218 = vector.extract_strided_slice %148 {offsets = [0, 24], sizes = [8, 8], strides = [1, 1]} : vector<8x32xbf16> to vector<8x8xbf16>
    %cst_70 = arith.constant dense<0.000000e+00> : vector<8x8xf32>
    %219 = tpu.matmul %217, %218, %cst_70 {dimension_numbers = #tpu.dot_dimension_numbers<[1], [1], [0], [0], [0, 0, 1, 0], [], []>} : vector<8x8xbf16>, vector<8x8xbf16>, vector<8x8xf32> -> vector<8x8xf32>
    %cst_71 = arith.constant -1.000000e+06 : f32
    %220 = vector.broadcast %cst_71 : f32 to vector<8x8xf32>
    %221 = arith.select %137, %219, %220 : vector<8x8xi1>, vector<8x8xf32>
    %cst_72 = arith.constant dense<0xFF800000> : vector<8xf32>
    %222 = vector.multi_reduction <maximumf>, %221, %cst_72 [1] : vector<8x8xf32> to vector<8xf32>
    %223 = vector.shape_cast %222 : vector<8xf32> to vector<8x1xf32>
    %224 = vector.broadcast %223 : vector<8x1xf32> to vector<8x8xf32>
    %225 = arith.subf %221, %224 : vector<8x8xf32>
    %226 = math.exp %225 : vector<8x8xf32>
    %cst_73 = arith.constant dense<0.000000e+00> : vector<8xf32>
    %227 = vector.multi_reduction <add>, %226, %cst_73 [1] : vector<8x8xf32> to vector<8xf32>
    %228 = vector.shape_cast %227 : vector<8xf32> to vector<8x1xf32>
    %229 = tpu.reciprocal %228 {approx = true} : vector<8x1xf32> -> vector<8x1xf32>
    %230 = vector.broadcast %229 : vector<8x1xf32> to vector<8x8xf32>
    %231 = arith.mulf %226, %230 : vector<8x8xf32>
    %232 = arith.truncf %231 : vector<8x8xf32> to vector<8x8xbf16>
    %233 = vector.extract_strided_slice %149 {offsets = [0, 24], sizes = [8, 8], strides = [1, 1]} : vector<8x32xbf16> to vector<8x8xbf16>
    %cst_74 = arith.constant dense<0.000000e+00> : vector<8x8xf32>
    %234 = tpu.matmul %232, %233, %cst_74 {dimension_numbers = #tpu.dot_dimension_numbers<[1], [0], [0], [1], [0, 0, 1, 1], [], []>} : vector<8x8xbf16>, vector<8x8xbf16>, vector<8x8xf32> -> vector<8x8xf32>
    %235 = arith.truncf %234 : vector<8x8xf32> to vector<8x8xbf16>
    %236 = vector.extract_strided_slice %146 {offsets = [0, 24], sizes = [32, 8], strides = [1, 1]} : vector<32x32xbf16> to vector<32x8xbf16>
    %cst_75 = arith.constant dense<0.000000e+00> : vector<8x32xf32>
    %237 = tpu.matmul %235, %236, %cst_75 {dimension_numbers = #tpu.dot_dimension_numbers<[1], [1], [0], [0], [0, 0, 1, 0], [], []>} : vector<8x8xbf16>, vector<32x8xbf16>, vector<8x32xf32> -> vector<8x32xf32>
    %238 = arith.addf %216, %237 : vector<8x32xf32>
    %239 = arith.addf %132, %238 : vector<8x32xf32>
    %c2 = arith.constant 2 : index
    %c0_76 = arith.constant 0 : index
    %240 = vector.load %arg4[%c2, %c0_76] : memref<8x64xf32, #tpu.memory_space<vmem>>, vector<1x32xf32>
    %c3 = arith.constant 3 : index
    %c0_77 = arith.constant 0 : index
    %241 = vector.load %arg4[%c3, %c0_77] : memref<8x64xf32, #tpu.memory_space<vmem>>, vector<1x32xf32>
    %cst_78 = arith.constant dense<0.000000e+00> : vector<8xf32>
    %242 = vector.multi_reduction <add>, %239, %cst_78 [1] : vector<8x32xf32> to vector<8xf32>
    %243 = vector.shape_cast %242 : vector<8xf32> to vector<8x1xf32>
    %cst_79 = arith.constant 3.200000e+01 : f32
    %244 = vector.broadcast %cst_79 : f32 to vector<8x1xf32>
    %245 = arith.divf %243, %244 : vector<8x1xf32>
    %246 = vector.broadcast %245 : vector<8x1xf32> to vector<8x32xf32>
    %247 = arith.subf %239, %246 : vector<8x32xf32>
    %248 = arith.mulf %247, %247 : vector<8x32xf32>
    %cst_80 = arith.constant dense<0.000000e+00> : vector<8xf32>
    %249 = vector.multi_reduction <add>, %248, %cst_80 [1] : vector<8x32xf32> to vector<8xf32>
    %250 = vector.shape_cast %249 : vector<8xf32> to vector<8x1xf32>
    %cst_81 = arith.constant 3.200000e+01 : f32
    %251 = vector.broadcast %cst_81 : f32 to vector<8x1xf32>
    %252 = arith.divf %250, %251 : vector<8x1xf32>
    %253 = vector.broadcast %245 : vector<8x1xf32> to vector<8x32xf32>
    %254 = arith.subf %239, %253 : vector<8x32xf32>
    %cst_82 = arith.constant 9.99999974E-6 : f32
    %255 = vector.broadcast %cst_82 : f32 to vector<8x1xf32>
    %256 = arith.addf %252, %255 : vector<8x1xf32>
    %257 = math.rsqrt %256 : vector<8x1xf32>
    %258 = vector.broadcast %257 : vector<8x1xf32> to vector<8x32xf32>
    %259 = arith.mulf %254, %258 : vector<8x32xf32>
    %260 = vector.broadcast %240 : vector<1x32xf32> to vector<8x32xf32>
    %261 = arith.mulf %259, %260 : vector<8x32xf32>
    %262 = vector.broadcast %241 : vector<1x32xf32> to vector<8x32xf32>
    %263 = arith.addf %261, %262 : vector<8x32xf32>
    %264 = arith.truncf %263 : vector<8x32xf32> to vector<8x32xbf16>
    %c256 = arith.constant 256 : index
    %c0_83 = arith.constant 0 : index
    %265 = vector.load %arg3[%c256, %c0_83] : memref<384x32xbf16, #tpu.memory_space<vmem>>, vector<64x32xbf16>
    %cst_84 = arith.constant dense<0.000000e+00> : vector<8x64xf32>
    %266 = tpu.matmul %264, %265, %cst_84 {dimension_numbers = #tpu.dot_dimension_numbers<[1], [1], [0], [0], [0, 0, 1, 0], [], []>} : vector<8x32xbf16>, vector<64x32xbf16>, vector<8x64xf32> -> vector<8x64xf32>
    %c7 = arith.constant 7 : index
    %c0_85 = arith.constant 0 : index
    %267 = vector.load %arg4[%c7, %c0_85] : memref<8x64xf32, #tpu.memory_space<vmem>>, vector<1x64xf32>
    %268 = vector.broadcast %267 : vector<1x64xf32> to vector<8x64xf32>
    %269 = arith.addf %266, %268 : vector<8x64xf32>
    %cst_86 = arith.constant 0.000000e+00 : f32
    %270 = vector.broadcast %cst_86 : f32 to vector<8x64xf32>
    %271 = arith.maximumf %269, %270 : vector<8x64xf32>
    %272 = arith.truncf %271 : vector<8x64xf32> to vector<8x64xbf16>
    %c320 = arith.constant 320 : index
    %c0_87 = arith.constant 0 : index
    %273 = vector.load %arg3[%c320, %c0_87] : memref<384x32xbf16, #tpu.memory_space<vmem>>, vector<64x32xbf16>
    %cst_88 = arith.constant dense<0.000000e+00> : vector<8x32xf32>
    %274 = tpu.matmul %272, %273, %cst_88 {dimension_numbers = #tpu.dot_dimension_numbers<[1], [0], [0], [1], [0, 0, 1, 1], [], []>} : vector<8x64xbf16>, vector<64x32xbf16>, vector<8x32xf32> -> vector<8x32xf32>
    %c6 = arith.constant 6 : index
    %c0_89 = arith.constant 0 : index
    %275 = vector.load %arg4[%c6, %c0_89] : memref<8x64xf32, #tpu.memory_space<vmem>>, vector<1x32xf32>
    %276 = vector.broadcast %275 : vector<1x32xf32> to vector<8x32xf32>
    %277 = arith.addf %274, %276 : vector<8x32xf32>
    %278 = arith.addf %263, %277 : vector<8x32xf32>
    %c4 = arith.constant 4 : index
    %c0_90 = arith.constant 0 : index
    %279 = vector.load %arg4[%c4, %c0_90] : memref<8x64xf32, #tpu.memory_space<vmem>>, vector<1x32xf32>
    %c5 = arith.constant 5 : index
    %c0_91 = arith.constant 0 : index
    %280 = vector.load %arg4[%c5, %c0_91] : memref<8x64xf32, #tpu.memory_space<vmem>>, vector<1x32xf32>
    %cst_92 = arith.constant dense<0.000000e+00> : vector<8xf32>
    %281 = vector.multi_reduction <add>, %278, %cst_92 [1] : vector<8x32xf32> to vector<8xf32>
    %282 = vector.shape_cast %281 : vector<8xf32> to vector<8x1xf32>
    %cst_93 = arith.constant 3.200000e+01 : f32
    %283 = vector.broadcast %cst_93 : f32 to vector<8x1xf32>
    %284 = arith.divf %282, %283 : vector<8x1xf32>
    %285 = vector.broadcast %284 : vector<8x1xf32> to vector<8x32xf32>
    %286 = arith.subf %278, %285 : vector<8x32xf32>
    %287 = arith.mulf %286, %286 : vector<8x32xf32>
    %cst_94 = arith.constant dense<0.000000e+00> : vector<8xf32>
    %288 = vector.multi_reduction <add>, %287, %cst_94 [1] : vector<8x32xf32> to vector<8xf32>
    %289 = vector.shape_cast %288 : vector<8xf32> to vector<8x1xf32>
    %cst_95 = arith.constant 3.200000e+01 : f32
    %290 = vector.broadcast %cst_95 : f32 to vector<8x1xf32>
    %291 = arith.divf %289, %290 : vector<8x1xf32>
    %292 = vector.broadcast %284 : vector<8x1xf32> to vector<8x32xf32>
    %293 = arith.subf %278, %292 : vector<8x32xf32>
    %cst_96 = arith.constant 9.99999974E-6 : f32
    %294 = vector.broadcast %cst_96 : f32 to vector<8x1xf32>
    %295 = arith.addf %291, %294 : vector<8x1xf32>
    %296 = math.rsqrt %295 : vector<8x1xf32>
    %297 = vector.broadcast %296 : vector<8x1xf32> to vector<8x32xf32>
    %298 = arith.mulf %293, %297 : vector<8x32xf32>
    %299 = vector.broadcast %279 : vector<1x32xf32> to vector<8x32xf32>
    %300 = arith.mulf %298, %299 : vector<8x32xf32>
    %301 = vector.broadcast %280 : vector<1x32xf32> to vector<8x32xf32>
    %302 = arith.addf %300, %301 : vector<8x32xf32>
    %c0_97 = arith.constant 0 : index
    %c0_98 = arith.constant 0 : index
    %c0_99 = arith.constant 0 : index
    %303 = vector.load %arg5[%c0_97, %c0_98, %c0_99] : memref<1x8x32xf32, #tpu.memory_space<vmem>>, vector<1x8x32xf32>
    %304 = vector.shape_cast %303 : vector<1x8x32xf32> to vector<8x32xf32>
    %305 = vector.shape_cast %302 : vector<8x32xf32> to vector<1x8x32xf32>
    tpu.vector_store %arg5[%c0_97, %c0_98, %c0_99], %305 {strides = array<i32>} : memref<1x8x32xf32, #tpu.memory_space<vmem>>, vector<1x8x32xf32>,
    return
  }
  func.func @transform_0(%arg0: i32, %arg1: memref<2xi32, #tpu.memory_space<smem>>) -> (i32, i32, i32) {
    %c0_i32 = arith.constant 0 : i32
    %c0_i32_0 = arith.constant 0 : i32
    %c0_i32_1 = arith.constant 0 : i32
    return %arg0, %c0_i32, %c0_i32_0 : i32, i32, i32
  }
  func.func @transform_1(%arg0: i32, %arg1: memref<2xi32, #tpu.memory_space<smem>>) -> (i32, i32) {
    %c0_i32 = arith.constant 0 : i32
    %c0_i32_0 = arith.constant 0 : i32
    %c0_i32_1 = arith.constant 0 : i32
    return %c0_i32, %c0_i32_0 : i32, i32
  }
  func.func @transform_2(%arg0: i32, %arg1: memref<2xi32, #tpu.memory_space<smem>>) -> (i32, i32) {
    %c0_i32 = arith.constant 0 : i32
    %c0_i32_0 = arith.constant 0 : i32
    %c0_i32_1 = arith.constant 0 : i32
    return %c0_i32, %c0_i32_0 : i32, i32
  }
  func.func @transform_3(%arg0: i32, %arg1: memref<2xi32, #tpu.memory_space<smem>>) -> (i32, i32, i32) {
    %c0_i32 = arith.constant 0 : i32
    %c0_i32_0 = arith.constant 0 : i32
    %c0_i32_1 = arith.constant 0 : i32
    return %arg0, %c0_i32, %c0_i32_0 : i32, i32, i32
  }
}

</mosaic_0001>

<llo_original>
// kernel: decoder_block.1
$region0: #{decoder_block.1}
  #allocation0 [shape = 'u32[]', space=smem, size = 0x4, offset = 0x4, fixed_abs, tag = 'smem constant byte address 0x4 - core index']
  #allocation1 [shape = 'u32[144,128]{1,0:T(1,128)}', space=vmem, size = 0x12000, scoped, tag = 'internal scratch']
  #allocation2 [shape = 's32[1]{0}', space=sflag, size = 0x4, scoped, tag = 'scoped memory for decoder_block.1']
  #allocation3 [shape = 'u8[512]{0}', space=smem, size = 0x200, scoped, tag = 'prefetched SMEM operand 0']
  %s0 = inlined_call_operand.vmem [shape: s32[2], index: 0, kind: input, shape index: {}]
  %s1 = inlined_call_operand.vmem [shape: f32[2,16,32], index: 1, kind: input, shape index: {}]
  %s2 = inlined_call_operand.vmem [shape: bf16[384,32], index: 2, kind: input, shape index: {}]
  %s3 = inlined_call_operand.vmem [shape: f32[8,64], index: 3, kind: input, shape index: {}]
  %s4 = inlined_call_operand.hbm [shape: f32[2,8,32], index: 4, kind: output, shape index: {}]
  %s5 = sld [smem:[#allocation0]]
  $region45: #{decoder_block.1} parent=0
    _
  %s7 = ssub.s32 1, %s5
  %s8 = scalar_select 0, %s7, %s5
  %s9 = sshll.u32 %s0, 4
  %s10 = int_to_ptr.vmem [resolvable:$true] %s9
  %12 = dma.vmem_to_smem %s10, 16, [#allocation3], [#allocation2]
  %13 = dma.done [#allocation2], 16
  %14 = sfence
  $region1: #{decoder_block.1} parent=0
    #allocation4 [shape = 'u8[8192]{0}', space=vmem, size = 0x2000, scoped, tag = 'output window, operand 0']
    #allocation5 [shape = 's32[2]{0}', space=sflag, size = 0x8, scoped, tag = 'scoped memory for decoder_block.1']
    %15 = vsyncpa [#allocation5], 0
    %s16 = scalar_lea.sflag [#allocation5], 1
    %17 = vsyncpa %s16, 0
    loop: start=0, step=1, limit=4
    $region2: #{decoder_block.1} parent=1 // loop_pre_header
      _
    $region3: #{decoder_block.1} parent=1 // loop_header
      %s19 = sphi 0, %s23
      %p20 = scmp.ge.s32.totalorder %s19, 4
      %s29 = sphi 0, %s31
      %s32 = sphi 0, %s29
      %s33 = sphi 0, %s32
      %s49 = sphi 0, %s33
      %s53 = sphi 0, %s53
      %s55 = sphi 0, %s53
      %s56 = sphi 0, %s55
      %s70 = sphi 0, %s56
      %s74 = sphi 0, %s74
      %s76 = sphi 0, %s74
      %s77 = sphi 0, %s76
      %s91 = sphi 0, %s77
      %s97 = sphi 0, %s99
      %s100 = sphi 0, %s97
      %s101 = sphi 0, %s100
      %s117 = sphi 0, %s101
    $region4: #{decoder_block.1} parent=1 // loop_header_branch
      %22 = sbr.rel (%p20) target = $region8
    $region5: #{decoder_block.1} parent=1 // loop_body
      %s24 = ssub.s32 %s19, 1
      %s25 = ssub.s32 %s19, 2
      %s26 = sadd.s32 %s19, 1
      %s27 = ssub.s32 %s19, %s26
      %p28 = scmp.eq.s32.totalorder %s27, 0
      %s30 = sadd.s32 %s29, 1
      %s31 = scalar_select %p28, %s29, %s30
      %p34 = pneg %p28
      %p35 = scmp.eq.s32.totalorder %s19, 1
      %p36 = por %p34, %p35
      %p37 = scmp.ne.s32.totalorder %s29, %s32
      %p38 = scmp.eq.s32.totalorder %s19, 0
      %p39 = por %p37, %p38
      %p40 = scmp.ne.s32.totalorder %s29, %s32
      %p41 = scmp.eq.s32.totalorder %s24, 1
      %p42 = por %p40, %p41
      %p43 = scmp.ne.s32.totalorder %s32, %s33
      %p44 = scmp.eq.s32.totalorder %s24, 0
      %p45 = por %p43, %p44
      %p46 = scmp.ne.s32.totalorder %s32, %s33
      %p47 = scmp.eq.s32.totalorder %s25, 1
      %p48 = por %p46, %p47
      %p50 = scmp.ne.s32.totalorder %s33, %s49
      %p51 = scmp.eq.s32.totalorder %s25, 0
      %p52 = por %p50, %p51
      %s54 = sadd.s32 %s53, 1
      %p57 = scmp.eq.s32.totalorder %s19, 1
      %p58 = scmp.ne.s32.totalorder %s53, %s55
      %p59 = scmp.eq.s32.totalorder %s19, 0
      %p60 = por %p58, %p59
      %p61 = scmp.ne.s32.totalorder %s53, %s55
      %p62 = scmp.eq.s32.totalorder %s24, 1
      %p63 = por %p61, %p62
      %p64 = scmp.ne.s32.totalorder %s55, %s56
      %p65 = scmp.eq.s32.totalorder %s24, 0
      %p66 = por %p64, %p65
      %p67 = scmp.ne.s32.totalorder %s55, %s56
      %p68 = scmp.eq.s32.totalorder %s25, 1
      %p69 = por %p67, %p68
      %p71 = scmp.ne.s32.totalorder %s56, %s70
      %p72 = scmp.eq.s32.totalorder %s25, 0
      %p73 = por %p71, %p72
      %s75 = sadd.s32 %s74, 1
      %p78 = scmp.eq.s32.totalorder %s19, 1
      %p79 = scmp.ne.s32.totalorder %s74, %s76
      %p80 = scmp.eq.s32.totalorder %s19, 0
      %p81 = por %p79, %p80
      %p82 = scmp.ne.s32.totalorder %s74, %s76
      %p83 = scmp.eq.s32.totalorder %s24, 1
      %p84 = por %p82, %p83
      %p85 = scmp.ne.s32.totalorder %s76, %s77
      %p86 = scmp.eq.s32.totalorder %s24, 0
      %p87 = por %p85, %p86
      %p88 = scmp.ne.s32.totalorder %s76, %s77
      %p89 = scmp.eq.s32.totalorder %s25, 1
      %p90 = por %p88, %p89
      %p92 = scmp.ne.s32.totalorder %s77, %s91
      %p93 = scmp.eq.s32.totalorder %s25, 0
      %p94 = por %p92, %p93
      %s95 = ssub.s32 %s19, %s26
      %p96 = scmp.eq.s32.totalorder %s95, 0
      %s98 = sadd.s32 %s97, 1
      %s99 = scalar_select %p96, %s97, %s98
      %p102 = pneg %p96
      %p103 = scmp.eq.s32.totalorder %s19, 1
      %p104 = por %p102, %p103
      %p105 = scmp.ne.s32.totalorder %s97, %s100
      %p106 = scmp.eq.s32.totalorder %s19, 0
      %p107 = por %p105, %p106
      %p108 = scmp.ne.s32.totalorder %s97, %s100
      %p109 = scmp.eq.s32.totalorder %s24, 1
      %p110 = por %p108, %p109
      %p111 = scmp.ne.s32.totalorder %s100, %s101
      %p112 = scmp.eq.s32.totalorder %s24, 0
      %p113 = por %p111, %p112
      %p114 = scmp.ne.s32.totalorder %s100, %s101
      %p115 = scmp.eq.s32.totalorder %s25, 1
      %p116 = por %p114, %p115
      %p118 = scmp.ne.s32.totalorder %s101, %s117
      %p119 = scmp.eq.s32.totalorder %s25, 0
      %p120 = por %p118, %p119
      %p121 = scmp.le.s32.totalorder 1, %s19
      %p122 = scmp.lt.s32.totalorder %s19, 3
      %p123 = pnand %p121, %p122
      %p124 = pneg %p123
      // Predicated region
      $region9: #{decoder_block.1} parent=5 // pred_check
        _
      $region10: #{decoder_block.1} parent=5 // pred_check_branch
        %126 = sbr.rel (%p123) target = $region12
      $region11: #{decoder_block.1} parent=5 // pred_region
        %s127 = ssub.s32 %s19, 1
        // Predicated region
        $region13: #{decoder_block.1} parent=11 // pred_check
          %p128 = pneg %p66
        $region14: #{decoder_block.1} parent=11 // pred_check_branch
          %130 = sbr.rel (%p128) target = $region16
        $region15: #{decoder_block.1} parent=11 // pred_region
          _
        $region16: #{decoder_block.1} parent=11 // pred_fallthru
          _
        // Predicated region
        $region17: #{decoder_block.1} parent=11 // pred_check
          %p131 = pneg %p87
        $region18: #{decoder_block.1} parent=11 // pred_check_branch
          %133 = sbr.rel (%p131) target = $region20
        $region19: #{decoder_block.1} parent=11 // pred_region
          _
        $region20: #{decoder_block.1} parent=11 // pred_fallthru
          _
      $region12: #{decoder_block.1} parent=5 // pred_fallthru
        _
      %p134 = scmp.lt.s32.totalorder %s19, 2
      // Predicated region
      $region21: #{decoder_block.1} parent=5 // pred_check
        %p135 = pneg %p134
      $region22: #{decoder_block.1} parent=5 // pred_check_branch
        %137 = sbr.rel (%p135) target = $region24
      $region23: #{decoder_block.1} parent=5 // pred_region
        // Predicated region
        $region25: #{decoder_block.1} parent=23 // pred_check
          %p138 = pneg %p39
        $region26: #{decoder_block.1} parent=23 // pred_check_branch
          %140 = sbr.rel (%p138) target = $region28
        $region27: #{decoder_block.1} parent=23 // pred_region
          %p141 = scmp.lt.s32.totalorder %s19, 1
          %s142 = scalar_select %p141, %s19, 1
          %s143 = smul.addr %s142, 2
          %s144 = smul.addr %s143, 8
          %s145 = scalar_lea.vmem %s1, %s144
        $region28: #{decoder_block.1} parent=23 // pred_fallthru
          _
      $region24: #{decoder_block.1} parent=5 // pred_fallthru
        _
      %p146 = scmp.le.s32.totalorder 1, %s19
      %p147 = scmp.lt.s32.totalorder %s19, 3
      %p148 = pnand %p146, %p147
      %p149 = pneg %p148
      // Predicated region
      $region29: #{decoder_block.1} parent=5 // pred_check
        _
      $region30: #{decoder_block.1} parent=5 // pred_check_branch
        %151 = sbr.rel (%p148) target = $region32
      $region31: #{decoder_block.1} parent=5 // pred_region
        %s152 = ssub.s32 %s19, 1
        %p153 = scmp.lt.s32.totalorder %s24, 1
        %s154 = scalar_select %p153, %s24, 1
        %s155 = smul.addr %s154, 2
        %s156 = smul.addr %s155, 8
        %s157 = scalar_lea.vmem %s1, %s156
        %p158 = pneg %p45
        %p159 = pneg %p42
        %p160 = pneg %p66
        %p161 = pneg %p63
        %p162 = pneg %p87
        %p163 = pneg %p84
        %p164 = pneg %p113
        %p165 = pneg %p110
        %s166 = sand.u32 %s100, 1
        %s167 = scalar_lea.sflag [#allocation5], %s166
        %s168 = sand.u32 %s100, 1
        %s169 = smul.addr %s168, 8
        %s170 = scalar_lea.vmem [#allocation4], %s169
        %p171 = scmp.lt.s32.totalorder %s24, 1
        %s172 = scalar_select %p171, %s24, 1
        %s173 = smul.addr %s172, 2
        %s174 = smul.addr %s173, 8
        %s175 = scalar_lea.vmem %s1, %s174
        %v177 = vld [vmem:[%s175] sm:$0xff]
        %v178 = vld [vmem:[%s175 + $0x8] sm:$0xff]
        %v179 = vlaneseq
        %v180 = vshrl.u32 %v179, 7
        %v181 = vlaneseq
        %v182 = vand.u32 %v181, 127
        %vm183 = vcmp.le.s32.totalorder %v182, %v180
        %v184 = vpack.c.bf16 %v177, %v177
        %v185 = vld [vmem:[%s2] sm:$0xf]
        %v186 = vld [vmem:[%s2 + $0x4] sm:$0xf]
        %v187 = vld [vmem:[%s2 + $0x8] sm:$0xf]
        %v188 = vld [vmem:[%s2 + $0xc] sm:$0xf]
        %v193 = vunpack.c.l.b16 %v185
        %v194 = vunpack.c.l.b16 %v186
        %v195 = vunpack.c.l.b16 %v187
        %v196 = vunpack.c.l.b16 %v188
        %v197 = vpack.c.b16 %v194, %v193
        %v198 = vpack.c.b16 %v196, %v195
        %vm201 = vcmask 261120
        %v203 = vsel %vm201, %v184, 0
        %205 = vmatprep.subr.bf16.mxu0 0
        %206 = vmatpush1.bf16.msra.mxu0 %v197
        %207 = vmatprep.subr.bf16.mxu0 0
        %208 = vmatpush1.bf16.msra.mxu0 %v198
        %209 = vmatprep.subr.bf16.mxu0 0
        %210 = vmatpush1.bf16.msra.mxu0 0
        %211 = vmatprep.subr.bf16.mxu0 0
        %212 = vmatpush1.bf16.msra.mxu0 0
        %213 = vmatprep.subr.bf16.mxu0 0
        %214 = vmatpush1.bf16.msra.mxu0 0
        %215 = vmatprep.subr.bf16.mxu0 0
        %216 = vmatpush1.bf16.msra.mxu0 0
        %217 = vmatprep.subr.bf16.mxu0 0
        %218 = vmatpush1.bf16.msra.mxu0 0
        %219 = vmatprep.subr.bf16.mxu0 0
        %220 = vmatpush1.bf16.msra.mxu0 0
        %221 = vmatprep.subr.bf16.mxu0 0
        %222 = vmatpush1.bf16.msra.mxu0 0
        %223 = vmatprep.subr.bf16.mxu0 0
        %224 = vmatpush1.bf16.msra.mxu0 0
        %225 = vmatprep.subr.bf16.mxu0 0
        %226 = vmatpush1.bf16.msra.mxu0 0
        %227 = vmatprep.subr.bf16.mxu0 0
        %228 = vmatpush1.bf16.msra.mxu0 0
        %229 = vmatprep.subr.bf16.mxu0 0
        %230 = vmatpush1.bf16.msra.mxu0 0
        %231 = vmatprep.subr.bf16.mxu0 0
        %232 = vmatpush1.bf16.msra.mxu0 0
        %233 = vmatprep.subr.bf16.mxu0 0
        %234 = vmatpush1.bf16.msra.mxu0 0
        %235 = vmatprep.subr.bf16.mxu0 0
        %236 = vmatpush1.bf16.msra.mxu0 0
        %237 = vmatprep.mubr.bf16.mxu0 0
        %238 = vmatmul.mubr.bf16.gmra.mrb[0].mxu0 %v203
        %v239 = vpop.f32.mrb[0].mxu0
        %v240 = vadd.f32 0.0, %v239
        %v241 = vpop.f32.mrb[0].mxu0
        %v242 = vpop.f32.mrb[0].mxu0
        %v243 = vpop.f32.mrb[0].mxu0
        %244 = vdwg.mxu0
        %v245 = vld [vmem:[%s2 + $0x10] sm:$0xf]
        %v246 = vld [vmem:[%s2 + $0x14] sm:$0xf]
        %v247 = vld [vmem:[%s2 + $0x18] sm:$0xf]
        %v248 = vld [vmem:[%s2 + $0x1c] sm:$0xf]
        %v253 = vunpack.c.l.b16 %v245
        %v254 = vunpack.c.l.b16 %v246
        %v255 = vunpack.c.l.b16 %v247
        %v256 = vunpack.c.l.b16 %v248
        %v257 = vpack.c.b16 %v254, %v253
        %v258 = vpack.c.b16 %v256, %v255
        %261 = vmatprep.subr.bf16.mxu0 0
        %262 = vmatpush1.bf16.msra.mxu0 %v257
        %263 = vmatprep.subr.bf16.mxu0 0
        %264 = vmatpush1.bf16.msra.mxu0 %v258
        %265 = vmatprep.subr.bf16.mxu0 0
        %266 = vmatpush1.bf16.msra.mxu0 0
        %267 = vmatprep.subr.bf16.mxu0 0
        %268 = vmatpush1.bf16.msra.mxu0 0
        %269 = vmatprep.subr.bf16.mxu0 0
        %270 = vmatpush1.bf16.msra.mxu0 0
        %271 = vmatprep.subr.bf16.mxu0 0
        %272 = vmatpush1.bf16.msra.mxu0 0
        %273 = vmatprep.subr.bf16.mxu0 0
        %274 = vmatpush1.bf16.msra.mxu0 0
        %275 = vmatprep.subr.bf16.mxu0 0
        %276 = vmatpush1.bf16.msra.mxu0 0
        %277 = vmatprep.subr.bf16.mxu0 0
        %278 = vmatpush1.bf16.msra.mxu0 0
        %279 = vmatprep.subr.bf16.mxu0 0
        %280 = vmatpush1.bf16.msra.mxu0 0
        %281 = vmatprep.subr.bf16.mxu0 0
        %282 = vmatpush1.bf16.msra.mxu0 0
        %283 = vmatprep.subr.bf16.mxu0 0
        %284 = vmatpush1.bf16.msra.mxu0 0
        %285 = vmatprep.subr.bf16.mxu0 0
        %286 = vmatpush1.bf16.msra.mxu0 0
        %287 = vmatprep.subr.bf16.mxu0 0
        %288 = vmatpush1.bf16.msra.mxu0 0
        %289 = vmatprep.subr.bf16.mxu0 0
        %290 = vmatpush1.bf16.msra.mxu0 0
        %291 = vmatprep.subr.bf16.mxu0 0
        %292 = vmatpush1.bf16.msra.mxu0 0
        %293 = vmatprep.mubr.bf16.mxu0 0
        %294 = vmatmul.mubr.bf16.gmra.mrb[0].mxu0 %v203
        %v295 = vpop.f32.mrb[0].mxu0
        %v296 = vadd.f32 0.0, %v295
        %v297 = vpop.f32.mrb[0].mxu0
        %v298 = vpop.f32.mrb[0].mxu0
        %v299 = vpop.f32.mrb[0].mxu0
        %300 = vdwg.mxu0
        %v301 = vld [vmem:[%s2 + $0x20] sm:$0xf]
        %v302 = vld [vmem:[%s2 + $0x24] sm:$0xf]
        %v303 = vld [vmem:[%s2 + $0x28] sm:$0xf]
        %v304 = vld [vmem:[%s2 + $0x2c] sm:$0xf]
        %v309 = vunpack.c.l.b16 %v301
        %v310 = vunpack.c.l.b16 %v302
        %v311 = vunpack.c.l.b16 %v303
        %v312 = vunpack.c.l.b16 %v304
        %v313 = vpack.c.b16 %v310, %v309
        %v314 = vpack.c.b16 %v312, %v311
        %317 = vmatprep.subr.bf16.mxu0 0
        %318 = vmatpush1.bf16.msra.mxu0 %v313
        %319 = vmatprep.subr.bf16.mxu0 0
        %320 = vmatpush1.bf16.msra.mxu0 %v314
        %321 = vmatprep.subr.bf16.mxu0 0
        %322 = vmatpush1.bf16.msra.mxu0 0
        %323 = vmatprep.subr.bf16.mxu0 0
        %324 = vmatpush1.bf16.msra.mxu0 0
        %325 = vmatprep.subr.bf16.mxu0 0
        %326 = vmatpush1.bf16.msra.mxu0 0
        %327 = vmatprep.subr.bf16.mxu0 0
        %328 = vmatpush1.bf16.msra.mxu0 0
        %329 = vmatprep.subr.bf16.mxu0 0
        %330 = vmatpush1.bf16.msra.mxu0 0
        %331 = vmatprep.subr.bf16.mxu0 0
        %332 = vmatpush1.bf16.msra.mxu0 0
        %333 = vmatprep.subr.bf16.mxu0 0
        %334 = vmatpush1.bf16.msra.mxu0 0
        %335 = vmatprep.subr.bf16.mxu0 0
        %336 = vmatpush1.bf16.msra.mxu0 0
        %337 = vmatprep.subr.bf16.mxu0 0
        %338 = vmatpush1.bf16.msra.mxu0 0
        %339 = vmatprep.subr.bf16.mxu0 0
        %340 = vmatpush1.bf16.msra.mxu0 0
        %341 = vmatprep.subr.bf16.mxu0 0
        %342 = vmatpush1.bf16.msra.mxu0 0
        %343 = vmatprep.subr.bf16.mxu0 0
        %344 = vmatpush1.bf16.msra.mxu0 0
        %345 = vmatprep.subr.bf16.mxu0 0
        %346 = vmatpush1.bf16.msra.mxu0 0
        %347 = vmatprep.subr.bf16.mxu0 0
        %348 = vmatpush1.bf16.msra.mxu0 0
        %349 = vmatprep.mubr.bf16.mxu0 0
        %350 = vmatmul.mubr.bf16.gmra.mrb[0].mxu0 %v203
        %v351 = vpop.f32.mrb[0].mxu0
        %v352 = vadd.f32 0.0, %v351
        %v353 = vpop.f32.mrb[0].mxu0
        %v354 = vpop.f32.mrb[0].mxu0
        %v355 = vpop.f32.mrb[0].mxu0
        %356 = vdwg.mxu0
        %v357 = vld [vmem:[%s2 + $0x30] sm:$0xf]
        %v358 = vld [vmem:[%s2 + $0x34] sm:$0xf]
        %v359 = vld [vmem:[%s2 + $0x38] sm:$0xf]
        %v360 = vld [vmem:[%s2 + $0x3c] sm:$0xf]
        %v361 = vpack.c.bf16 %v240, %v240
        %v362 = vpack.c.bf16 %v296, %v296
        %v363 = vpack.c.bf16 %v352, %v352
        %vm364 = vcmask 64512
        %v366 = vsel %vm364, %v361, 0
        %v369 = vsel %vm364, %v362, 0
        %371 = vmatprep.subr.bf16.mxu0 0
        %372 = vmatpush1.bf16.xpose.msra.mxu0 %v369
        %373 = vmatprep.subr.bf16.mxu0 0
        %374 = vmatpush1.bf16.xpose.msra.mxu0 0
        %375 = vmatprep.subr.bf16.mxu0 0
        %376 = vmatpush1.bf16.xpose.msra.mxu0 0
        %377 = vmatprep.subr.bf16.mxu0 0
        %378 = vmatpush1.bf16.xpose.msra.mxu0 0
        %379 = vmatprep.subr.bf16.mxu0 0
        %380 = vmatpush1.bf16.xpose.msra.mxu0 0
        %381 = vmatprep.subr.bf16.mxu0 0
        %382 = vmatpush1.bf16.xpose.msra.mxu0 0
        %383 = vmatprep.subr.bf16.mxu0 0
        %384 = vmatpush1.bf16.xpose.msra.mxu0 0
        %385 = vmatprep.subr.bf16.mxu0 0
        %386 = vmatpush1.bf16.xpose.msra.mxu0 0
        %387 = vmatprep.subr.bf16.mxu0 0
        %388 = vmatpush1.bf16.xpose.msra.mxu0 0
        %389 = vmatprep.subr.bf16.mxu0 0
        %390 = vmatpush1.bf16.xpose.msra.mxu0 0
        %391 = vmatprep.subr.bf16.mxu0 0
        %392 = vmatpush1.bf16.xpose.msra.mxu0 0
        %393 = vmatprep.subr.bf16.mxu0 0
        %394 = vmatpush1.bf16.xpose.msra.mxu0 0
        %395 = vmatprep.subr.bf16.mxu0 0
        %396 = vmatpush1.bf16.xpose.msra.mxu0 0
        %397 = vmatprep.subr.bf16.mxu0 0
        %398 = vmatpush1.bf16.xpose.msra.mxu0 0
        %399 = vmatprep.subr.bf16.mxu0 0
        %400 = vmatpush1.bf16.xpose.msra.mxu0 0
        %401 = vmatprep.subr.bf16.mxu0 0
        %402 = vmatpush1.bf16.xpose.msra.mxu0 0
        %403 = vmatprep.mubr.bf16.mxu0 0
        %404 = vmatmul.mubr.bf16.gmra.mrb[0].mxu0 %v366
        %v405 = vpop.f32.mrb[0].mxu0
        %v406 = vadd.f32 0.0, %v405
        %v407 = vpop.f32.mrb[0].mxu0
        %v408 = vpop.f32.mrb[0].mxu0
        %v409 = vpop.f32.mrb[0].mxu0
        %410 = vdwg.mxu0
        %v411 = vsel %vm183, %v406, -1000000.0
        %v412 = vsel %vm364, %v411, -inf
        %413 = vmax.xlane.f32.xlu0 %v412
        %v414 = vpop.xlane.xlu0 %413
        %v415 = vsub.f32 %v411, %v414
        %v416 = vmul.f32 %v415, 1.442695
        %v417 = vpow.pop %v416
        %v418 = vsel %vm364, %v417, 0.0
        %419 = vadd.xlane.f32.xlu0 %v418
        %v420 = vpop.xlane.xlu0 %419
        %v421 = vrcp.pop %v420
        %v422 = vmul.f32 %v417, %v421
        %v423 = vpack.c.bf16 %v422, %v422
        %v425 = vsel %vm364, %v423, 0
        %vm427 = vcmask 1043456
        %v429 = vsel %vm427, %v363, 0
        %431 = vmatprep.subr.bf16.mxu0 0
        %432 = vmatpush1.bf16.msra.mxu0 %v429
        %433 = vmatprep.subr.bf16.mxu0 0
        %434 = vmatpush1.bf16.msra.mxu0 0
        %435 = vmatprep.subr.bf16.mxu0 0
        %436 = vmatpush1.bf16.msra.mxu0 0
        %437 = vmatprep.subr.bf16.mxu0 0
        %438 = vmatpush1.bf16.msra.mxu0 0
        %439 = vmatprep.subr.bf16.mxu0 0
        %440 = vmatpush1.bf16.msra.mxu0 0
        %441 = vmatprep.subr.bf16.mxu0 0
        %442 = vmatpush1.bf16.msra.mxu0 0
        %443 = vmatprep.subr.bf16.mxu0 0
        %444 = vmatpush1.bf16.msra.mxu0 0
        %445 = vmatprep.subr.bf16.mxu0 0
        %446 = vmatpush1.bf16.msra.mxu0 0
        %447 = vmatprep.subr.bf16.mxu0 0
        %448 = vmatpush1.bf16.msra.mxu0 0
        %449 = vmatprep.subr.bf16.mxu0 0
        %450 = vmatpush1.bf16.msra.mxu0 0
        %451 = vmatprep.subr.bf16.mxu0 0
        %452 = vmatpush1.bf16.msra.mxu0 0
        %453 = vmatprep.subr.bf16.mxu0 0
        %454 = vmatpush1.bf16.msra.mxu0 0
        %455 = vmatprep.subr.bf16.mxu0 0
        %456 = vmatpush1.bf16.msra.mxu0 0
        %457 = vmatprep.subr.bf16.mxu0 0
        %458 = vmatpush1.bf16.msra.mxu0 0
        %459 = vmatprep.subr.bf16.mxu0 0
        %460 = vmatpush1.bf16.msra.mxu0 0
        %461 = vmatprep.subr.bf16.mxu0 0
        %462 = vmatpush1.bf16.msra.mxu0 0
        %463 = vmatprep.mubr.bf16.mxu0 0
        %464 = vmatmul.mubr.bf16.gmra.mrb[0].mxu0 %v425
        %v465 = vpop.f32.mrb[0].mxu0
        %v466 = vadd.f32 0.0, %v465
        %v467 = vpop.f32.mrb[0].mxu0
        %v468 = vpop.f32.mrb[0].mxu0
        %v469 = vpop.f32.mrb[0].mxu0
        %470 = vdwg.mxu0
        %v471 = vpack.c.bf16 %v466, %v466
        %473 = vrot.lane.b32.xlu0 %v361, 120
        %v474 = vpop.permute.xlu0 %473
        %476 = vrot.lane.b32.xlu0 %v362, 120
        %v477 = vpop.permute.xlu0 %476
        %v479 = vsel %vm364, %v474, 0
        %v482 = vsel %vm364, %v477, 0
        %484 = vmatprep.subr.bf16.mxu0 0
        %485 = vmatpush1.bf16.xpose.msra.mxu0 %v482
        %486 = vmatprep.subr.bf16.mxu0 0
        %487 = vmatpush1.bf16.xpose.msra.mxu0 0
        %488 = vmatprep.subr.bf16.mxu0 0
        %489 = vmatpush1.bf16.xpose.msra.mxu0 0
        %490 = vmatprep.subr.bf16.mxu0 0
        %491 = vmatpush1.bf16.xpose.msra.mxu0 0
        %492 = vmatprep.subr.bf16.mxu0 0
        %493 = vmatpush1.bf16.xpose.msra.mxu0 0
        %494 = vmatprep.subr.bf16.mxu0 0
        %495 = vmatpush1.bf16.xpose.msra.mxu0 0
        %496 = vmatprep.subr.bf16.mxu0 0
        %497 = vmatpush1.bf16.xpose.msra.mxu0 0
        %498 = vmatprep.subr.bf16.mxu0 0
        %499 = vmatpush1.bf16.xpose.msra.mxu0 0
        %500 = vmatprep.subr.bf16.mxu0 0
        %501 = vmatpush1.bf16.xpose.msra.mxu0 0
        %502 = vmatprep.subr.bf16.mxu0 0
        %503 = vmatpush1.bf16.xpose.msra.mxu0 0
        %504 = vmatprep.subr.bf16.mxu0 0
        %505 = vmatpush1.bf16.xpose.msra.mxu0 0
        %506 = vmatprep.subr.bf16.mxu0 0
        %507 = vmatpush1.bf16.xpose.msra.mxu0 0
        %508 = vmatprep.subr.bf16.mxu0 0
        %509 = vmatpush1.bf16.xpose.msra.mxu0 0
        %510 = vmatprep.subr.bf16.mxu0 0
        %511 = vmatpush1.bf16.xpose.msra.mxu0 0
        %512 = vmatprep.subr.bf16.mxu0 0
        %513 = vmatpush1.bf16.xpose.msra.mxu0 0
        %514 = vmatprep.subr.bf16.mxu0 0
        %515 = vmatpush1.bf16.xpose.msra.mxu0 0
        %516 = vmatprep.mubr.bf16.mxu0 0
        %517 = vmatmul.mubr.bf16.gmra.mrb[0].mxu0 %v479
        %v518 = vpop.f32.mrb[0].mxu0
        %v519 = vadd.f32 0.0, %v518
        %v520 = vpop.f32.mrb[0].mxu0
        %v521 = vpop.f32.mrb[0].mxu0
        %v522 = vpop.f32.mrb[0].mxu0
        %523 = vdwg.mxu0
        %v524 = vsel %vm183, %v519, -1000000.0
        %v525 = vsel %vm364, %v524, -inf
        %526 = vmax.xlane.f32.xlu0 %v525
        %v527 = vpop.xlane.xlu0 %526
        %v528 = vsub.f32 %v524, %v527
        %v529 = vmul.f32 %v528, 1.442695
        %v530 = vpow.pop %v529
        %v531 = vsel %vm364, %v530, 0.0
        %532 = vadd.xlane.f32.xlu0 %v531
        %v533 = vpop.xlane.xlu0 %532
        %v534 = vrcp.pop %v533
        %v535 = vmul.f32 %v530, %v534
        %v536 = vpack.c.bf16 %v535, %v535
        %538 = vrot.lane.b32.xlu0 %v363, 120
        %v539 = vpop.permute.xlu0 %538
        %v541 = vsel %vm364, %v536, 0
        %v544 = vsel %vm427, %v539, 0
        %546 = vmatprep.subr.bf16.mxu0 0
        %547 = vmatpush1.bf16.msra.mxu0 %v544
        %548 = vmatprep.subr.bf16.mxu0 0
        %549 = vmatpush1.bf16.msra.mxu0 0
        %550 = vmatprep.subr.bf16.mxu0 0
        %551 = vmatpush1.bf16.msra.mxu0 0
        %552 = vmatprep.subr.bf16.mxu0 0
        %553 = vmatpush1.bf16.msra.mxu0 0
        %554 = vmatprep.subr.bf16.mxu0 0
        %555 = vmatpush1.bf16.msra.mxu0 0
        %556 = vmatprep.subr.bf16.mxu0 0
        %557 = vmatpush1.bf16.msra.mxu0 0
        %558 = vmatprep.subr.bf16.mxu0 0
        %559 = vmatpush1.bf16.msra.mxu0 0
        %560 = vmatprep.subr.bf16.mxu0 0
        %561 = vmatpush1.bf16.msra.mxu0 0
        %562 = vmatprep.subr.bf16.mxu0 0
        %563 = vmatpush1.bf16.msra.mxu0 0
        %564 = vmatprep.subr.bf16.mxu0 0
        %565 = vmatpush1.bf16.msra.mxu0 0
        %566 = vmatprep.subr.bf16.mxu0 0
        %567 = vmatpush1.bf16.msra.mxu0 0
        %568 = vmatprep.subr.bf16.mxu0 0
        %569 = vmatpush1.bf16.msra.mxu0 0
        %570 = vmatprep.subr.bf16.mxu0 0
        %571 = vmatpush1.bf16.msra.mxu0 0
        %572 = vmatprep.subr.bf16.mxu0 0
        %573 = vmatpush1.bf16.msra.mxu0 0
        %574 = vmatprep.subr.bf16.mxu0 0
        %575 = vmatpush1.bf16.msra.mxu0 0
        %576 = vmatprep.subr.bf16.mxu0 0
        %577 = vmatpush1.bf16.msra.mxu0 0
        %578 = vmatprep.mubr.bf16.mxu0 0
        %579 = vmatmul.mubr.bf16.gmra.mrb[0].mxu0 %v541
        %v580 = vpop.f32.mrb[0].mxu0
        %v581 = vadd.f32 0.0, %v580
        %v582 = vpop.f32.mrb[0].mxu0
        %v583 = vpop.f32.mrb[0].mxu0
        %v584 = vpop.f32.mrb[0].mxu0
        %585 = vdwg.mxu0
        %v586 = vpack.c.bf16 %v581, %v581
        %v591 = vunpack.c.l.b16 %v357
        %v592 = vunpack.c.l.b16 %v358
        %v593 = vunpack.c.l.b16 %v359
        %v594 = vunpack.c.l.b16 %v360
        %v595 = vpack.c.b16 %v592, %v591
        %v596 = vpack.c.b16 %v594, %v593
        %597 = vrot.lane.b32.xlu0 %v595, 120
        %v598 = vpop.permute.xlu0 %597
        %599 = vrot.lane.b32.xlu0 %v596, 120
        %v600 = vpop.permute.xlu0 %599
        %v602 = vsel %vm364, %v586, 0
        %v605 = vsel %vm364, %v598, 0
        %v608 = vsel %vm364, %v600, 0
        %610 = vmatprep.subr.bf16.mxu0 0
        %611 = vmatpush1.bf16.xpose.msra.mxu0 %v605
        %612 = vmatprep.subr.bf16.mxu0 0
        %613 = vmatpush1.bf16.xpose.msra.mxu0 %v608
        %614 = vmatprep.subr.bf16.mxu0 0
        %615 = vmatpush1.bf16.xpose.msra.mxu0 0
        %616 = vmatprep.subr.bf16.mxu0 0
        %617 = vmatpush1.bf16.xpose.msra.mxu0 0
        %618 = vmatprep.subr.bf16.mxu0 0
        %619 = vmatpush1.bf16.xpose.msra.mxu0 0
        %620 = vmatprep.subr.bf16.mxu0 0
        %621 = vmatpush1.bf16.xpose.msra.mxu0 0
        %622 = vmatprep.subr.bf16.mxu0 0
        %623 = vmatpush1.bf16.xpose.msra.mxu0 0
        %624 = vmatprep.subr.bf16.mxu0 0
        %625 = vmatpush1.bf16.xpose.msra.mxu0 0
        %626 = vmatprep.subr.bf16.mxu0 0
        %627 = vmatpush1.bf16.xpose.msra.mxu0 0
        %628 = vmatprep.subr.bf16.mxu0 0
        %629 = vmatpush1.bf16.xpose.msra.mxu0 0
        %630 = vmatprep.subr.bf16.mxu0 0
        %631 = vmatpush1.bf16.xpose.msra.mxu0 0
        %632 = vmatprep.subr.bf16.mxu0 0
        %633 = vmatpush1.bf16.xpose.msra.mxu0 0
        %634 = vmatprep.subr.bf16.mxu0 0
        %635 = vmatpush1.bf16.xpose.msra.mxu0 0
        %636 = vmatprep.subr.bf16.mxu0 0
        %637 = vmatpush1.bf16.xpose.msra.mxu0 0
        %638 = vmatprep.subr.bf16.mxu0 0
        %639 = vmatpush1.bf16.xpose.msra.mxu0 0
        %640 = vmatprep.subr.bf16.mxu0 0
        %641 = vmatpush1.bf16.xpose.msra.mxu0 0
        %642 = vmatprep.mubr.bf16.mxu0 0
        %643 = vmatmul.mubr.bf16.gmra.mrb[0].mxu0 %v602
        %v644 = vpop.f32.mrb[0].mxu0
        %v645 = vadd.f32 0.0, %v644
        %v646 = vpop.f32.mrb[0].mxu0
        %v647 = vpop.f32.mrb[0].mxu0
        %v648 = vpop.f32.mrb[0].mxu0
        %649 = vdwg.mxu0
        %v651 = vsel %vm364, %v471, 0
        %v654 = vsel %vm364, %v595, 0
        %v657 = vsel %vm364, %v596, 0
        %659 = vmatprep.subr.bf16.mxu0 0
        %660 = vmatpush1.bf16.xpose.msra.mxu0 %v654
        %661 = vmatprep.subr.bf16.mxu0 0
        %662 = vmatpush1.bf16.xpose.msra.mxu0 %v657
        %663 = vmatprep.subr.bf16.mxu0 0
        %664 = vmatpush1.bf16.xpose.msra.mxu0 0
        %665 = vmatprep.subr.bf16.mxu0 0
        %666 = vmatpush1.bf16.xpose.msra.mxu0 0
        %667 = vmatprep.subr.bf16.mxu0 0
        %668 = vmatpush1.bf16.xpose.msra.mxu0 0
        %669 = vmatprep.subr.bf16.mxu0 0
        %670 = vmatpush1.bf16.xpose.msra.mxu0 0
        %671 = vmatprep.subr.bf16.mxu0 0
        %672 = vmatpush1.bf16.xpose.msra.mxu0 0
        %673 = vmatprep.subr.bf16.mxu0 0
        %674 = vmatpush1.bf16.xpose.msra.mxu0 0
        %675 = vmatprep.subr.bf16.mxu0 0
        %676 = vmatpush1.bf16.xpose.msra.mxu0 0
        %677 = vmatprep.subr.bf16.mxu0 0
        %678 = vmatpush1.bf16.xpose.msra.mxu0 0
        %679 = vmatprep.subr.bf16.mxu0 0
        %680 = vmatpush1.bf16.xpose.msra.mxu0 0
        %681 = vmatprep.subr.bf16.mxu0 0
        %682 = vmatpush1.bf16.xpose.msra.mxu0 0
        %683 = vmatprep.subr.bf16.mxu0 0
        %684 = vmatpush1.bf16.xpose.msra.mxu0 0
        %685 = vmatprep.subr.bf16.mxu0 0
        %686 = vmatpush1.bf16.xpose.msra.mxu0 0
        %687 = vmatprep.subr.bf16.mxu0 0
        %688 = vmatpush1.bf16.xpose.msra.mxu0 0
        %689 = vmatprep.subr.bf16.mxu0 0
        %690 = vmatpush1.bf16.xpose.msra.mxu0 0
        %691 = vmatprep.mubr.bf16.mxu0 0
        %692 = vmatmul.mubr.bf16.gmra.mrb[0].mxu0 %v651
        %v693 = vpop.f32.mrb[0].mxu0
        %v694 = vadd.f32 %v645, %v693
        %v695 = vpop.f32.mrb[0].mxu0
        %v696 = vpop.f32.mrb[0].mxu0
        %v697 = vpop.f32.mrb[0].mxu0
        %698 = vdwg.mxu0
        %699 = vrot.lane.b32.xlu0 %v361, 112
        %v700 = vpop.permute.xlu0 %699
        %701 = vrot.lane.b32.xlu0 %v362, 112
        %v702 = vpop.permute.xlu0 %701
        %v704 = vsel %vm364, %v700, 0
        %v707 = vsel %vm364, %v702, 0
        %709 = vmatprep.subr.bf16.mxu0 0
        %710 = vmatpush1.bf16.xpose.msra.mxu0 %v707
        %711 = vmatprep.subr.bf16.mxu0 0
        %712 = vmatpush1.bf16.xpose.msra.mxu0 0
        %713 = vmatprep.subr.bf16.mxu0 0
        %714 = vmatpush1.bf16.xpose.msra.mxu0 0
        %715 = vmatprep.subr.bf16.mxu0 0
        %716 = vmatpush1.bf16.xpose.msra.mxu0 0
        %717 = vmatprep.subr.bf16.mxu0 0
        %718 = vmatpush1.bf16.xpose.msra.mxu0 0
        %719 = vmatprep.subr.bf16.mxu0 0
        %720 = vmatpush1.bf16.xpose.msra.mxu0 0
        %721 = vmatprep.subr.bf16.mxu0 0
        %722 = vmatpush1.bf16.xpose.msra.mxu0 0
        %723 = vmatprep.subr.bf16.mxu0 0
        %724 = vmatpush1.bf16.xpose.msra.mxu0 0
        %725 = vmatprep.subr.bf16.mxu0 0
        %726 = vmatpush1.bf16.xpose.msra.mxu0 0
        %727 = vmatprep.subr.bf16.mxu0 0
        %728 = vmatpush1.bf16.xpose.msra.mxu0 0
        %729 = vmatprep.subr.bf16.mxu0 0
        %730 = vmatpush1.bf16.xpose.msra.mxu0 0
        %731 = vmatprep.subr.bf16.mxu0 0
        %732 = vmatpush1.bf16.xpose.msra.mxu0 0
        %733 = vmatprep.subr.bf16.mxu0 0
        %734 = vmatpush1.bf16.xpose.msra.mxu0 0
        %735 = vmatprep.subr.bf16.mxu0 0
        %736 = vmatpush1.bf16.xpose.msra.mxu0 0
        %737 = vmatprep.subr.bf16.mxu0 0
        %738 = vmatpush1.bf16.xpose.msra.mxu0 0
        %739 = vmatprep.subr.bf16.mxu0 0
        %740 = vmatpush1.bf16.xpose.msra.mxu0 0
        %741 = vmatprep.mubr.bf16.mxu0 0
        %742 = vmatmul.mubr.bf16.gmra.mrb[0].mxu0 %v704
        %v743 = vpop.f32.mrb[0].mxu0
        %v744 = vadd.f32 0.0, %v743
        %v745 = vpop.f32.mrb[0].mxu0
        %v746 = vpop.f32.mrb[0].mxu0
        %v747 = vpop.f32.mrb[0].mxu0
        %748 = vdwg.mxu0
        %v749 = vsel %vm183, %v744, -1000000.0
        %v750 = vsel %vm364, %v749, -inf
        %751 = vmax.xlane.f32.xlu0 %v750
        %v752 = vpop.xlane.xlu0 %751
        %v753 = vsub.f32 %v749, %v752
        %v754 = vmul.f32 %v753, 1.442695
        %v755 = vpow.pop %v754
        %v756 = vsel %vm364, %v755, 0.0
        %757 = vadd.xlane.f32.xlu0 %v756
        %v758 = vpop.xlane.xlu0 %757
        %v759 = vrcp.pop %v758
        %v760 = vmul.f32 %v755, %v759
        %v761 = vpack.c.bf16 %v760, %v760
        %762 = vrot.lane.b32.xlu0 %v363, 112
        %v763 = vpop.permute.xlu0 %762
        %v765 = vsel %vm364, %v761, 0
        %v768 = vsel %vm427, %v763, 0
        %770 = vmatprep.subr.bf16.mxu0 0
        %771 = vmatpush1.bf16.msra.mxu0 %v768
        %772 = vmatprep.subr.bf16.mxu0 0
        %773 = vmatpush1.bf16.msra.mxu0 0
        %774 = vmatprep.subr.bf16.mxu0 0
        %775 = vmatpush1.bf16.msra.mxu0 0
        %776 = vmatprep.subr.bf16.mxu0 0
        %777 = vmatpush1.bf16.msra.mxu0 0
        %778 = vmatprep.subr.bf16.mxu0 0
        %779 = vmatpush1.bf16.msra.mxu0 0
        %780 = vmatprep.subr.bf16.mxu0 0
        %781 = vmatpush1.bf16.msra.mxu0 0
        %782 = vmatprep.subr.bf16.mxu0 0
        %783 = vmatpush1.bf16.msra.mxu0 0
        %784 = vmatprep.subr.bf16.mxu0 0
        %785 = vmatpush1.bf16.msra.mxu0 0
        %786 = vmatprep.subr.bf16.mxu0 0
        %787 = vmatpush1.bf16.msra.mxu0 0
        %788 = vmatprep.subr.bf16.mxu0 0
        %789 = vmatpush1.bf16.msra.mxu0 0
        %790 = vmatprep.subr.bf16.mxu0 0
        %791 = vmatpush1.bf16.msra.mxu0 0
        %792 = vmatprep.subr.bf16.mxu0 0
        %793 = vmatpush1.bf16.msra.mxu0 0
        %794 = vmatprep.subr.bf16.mxu0 0
        %795 = vmatpush1.bf16.msra.mxu0 0
        %796 = vmatprep.subr.bf16.mxu0 0
        %797 = vmatpush1.bf16.msra.mxu0 0
        %798 = vmatprep.subr.bf16.mxu0 0
        %799 = vmatpush1.bf16.msra.mxu0 0
        %800 = vmatprep.subr.bf16.mxu0 0
        %801 = vmatpush1.bf16.msra.mxu0 0
        %802 = vmatprep.mubr.bf16.mxu0 0
        %803 = vmatmul.mubr.bf16.gmra.mrb[0].mxu0 %v765
        %v804 = vpop.f32.mrb[0].mxu0
        %v805 = vadd.f32 0.0, %v804
        %v806 = vpop.f32.mrb[0].mxu0
        %v807 = vpop.f32.mrb[0].mxu0
        %v808 = vpop.f32.mrb[0].mxu0
        %809 = vdwg.mxu0
        %v810 = vpack.c.bf16 %v805, %v805
        %811 = vrot.lane.b32.xlu0 %v595, 112
        %v812 = vpop.permute.xlu0 %811
        %813 = vrot.lane.b32.xlu0 %v596, 112
        %v814 = vpop.permute.xlu0 %813
        %v816 = vsel %vm364, %v810, 0
        %v819 = vsel %vm364, %v812, 0
        %v822 = vsel %vm364, %v814, 0
        %824 = vmatprep.subr.bf16.mxu0 0
        %825 = vmatpush1.bf16.xpose.msra.mxu0 %v819
        %826 = vmatprep.subr.bf16.mxu0 0
        %827 = vmatpush1.bf16.xpose.msra.mxu0 %v822
        %828 = vmatprep.subr.bf16.mxu0 0
        %829 = vmatpush1.bf16.xpose.msra.mxu0 0
        %830 = vmatprep.subr.bf16.mxu0 0
        %831 = vmatpush1.bf16.xpose.msra.mxu0 0
        %832 = vmatprep.subr.bf16.mxu0 0
        %833 = vmatpush1.bf16.xpose.msra.mxu0 0
        %834 = vmatprep.subr.bf16.mxu0 0
        %835 = vmatpush1.bf16.xpose.msra.mxu0 0
        %836 = vmatprep.subr.bf16.mxu0 0
        %837 = vmatpush1.bf16.xpose.msra.mxu0 0
        %838 = vmatprep.subr.bf16.mxu0 0
        %839 = vmatpush1.bf16.xpose.msra.mxu0 0
        %840 = vmatprep.subr.bf16.mxu0 0
        %841 = vmatpush1.bf16.xpose.msra.mxu0 0
        %842 = vmatprep.subr.bf16.mxu0 0
        %843 = vmatpush1.bf16.xpose.msra.mxu0 0
        %844 = vmatprep.subr.bf16.mxu0 0
        %845 = vmatpush1.bf16.xpose.msra.mxu0 0
        %846 = vmatprep.subr.bf16.mxu0 0
        %847 = vmatpush1.bf16.xpose.msra.mxu0 0
        %848 = vmatprep.subr.bf16.mxu0 0
        %849 = vmatpush1.bf16.xpose.msra.mxu0 0
        %850 = vmatprep.subr.bf16.mxu0 0
        %851 = vmatpush1.bf16.xpose.msra.mxu0 0
        %852 = vmatprep.subr.bf16.mxu0 0
        %853 = vmatpush1.bf16.xpose.msra.mxu0 0
        %854 = vmatprep.subr.bf16.mxu0 0
        %855 = vmatpush1.bf16.xpose.msra.mxu0 0
        %856 = vmatprep.mubr.bf16.mxu0 0
        %857 = vmatmul.mubr.bf16.gmra.mrb[0].mxu0 %v816
        %v858 = vpop.f32.mrb[0].mxu0
        %v859 = vadd.f32 0.0, %v858
        %v860 = vpop.f32.mrb[0].mxu0
        %v861 = vpop.f32.mrb[0].mxu0
        %v862 = vpop.f32.mrb[0].mxu0
        %863 = vdwg.mxu0
        %v864 = vadd.f32 %v694, %v859
        %865 = vrot.lane.b32.xlu0 %v361, 104
        %v866 = vpop.permute.xlu0 %865
        %867 = vrot.lane.b32.xlu0 %v362, 104
        %v868 = vpop.permute.xlu0 %867
        %v870 = vsel %vm364, %v866, 0
        %v873 = vsel %vm364, %v868, 0
        %875 = vmatprep.subr.bf16.mxu0 0
        %876 = vmatpush1.bf16.xpose.msra.mxu0 %v873
        %877 = vmatprep.subr.bf16.mxu0 0
        %878 = vmatpush1.bf16.xpose.msra.mxu0 0
        %879 = vmatprep.subr.bf16.mxu0 0
        %880 = vmatpush1.bf16.xpose.msra.mxu0 0
        %881 = vmatprep.subr.bf16.mxu0 0
        %882 = vmatpush1.bf16.xpose.msra.mxu0 0
        %883 = vmatprep.subr.bf16.mxu0 0
        %884 = vmatpush1.bf16.xpose.msra.mxu0 0
        %885 = vmatprep.subr.bf16.mxu0 0
        %886 = vmatpush1.bf16.xpose.msra.mxu0 0
        %887 = vmatprep.subr.bf16.mxu0 0
        %888 = vmatpush1.bf16.xpose.msra.mxu0 0
        %889 = vmatprep.subr.bf16.mxu0 0
        %890 = vmatpush1.bf16.xpose.msra.mxu0 0
        %891 = vmatprep.subr.bf16.mxu0 0
        %892 = vmatpush1.bf16.xpose.msra.mxu0 0
        %893 = vmatprep.subr.bf16.mxu0 0
        %894 = vmatpush1.bf16.xpose.msra.mxu0 0
        %895 = vmatprep.subr.bf16.mxu0 0
        %896 = vmatpush1.bf16.xpose.msra.mxu0 0
        %897 = vmatprep.subr.bf16.mxu0 0
        %898 = vmatpush1.bf16.xpose.msra.mxu0 0
        %899 = vmatprep.subr.bf16.mxu0 0
        %900 = vmatpush1.bf16.xpose.msra.mxu0 0
        %901 = vmatprep.subr.bf16.mxu0 0
        %902 = vmatpush1.bf16.xpose.msra.mxu0 0
        %903 = vmatprep.subr.bf16.mxu0 0
        %904 = vmatpush1.bf16.xpose.msra.mxu0 0
        %905 = vmatprep.subr.bf16.mxu0 0
        %906 = vmatpush1.bf16.xpose.msra.mxu0 0
        %907 = vmatprep.mubr.bf16.mxu0 0
        %908 = vmatmul.mubr.bf16.gmra.mrb[0].mxu0 %v870
        %v909 = vpop.f32.mrb[0].mxu0
        %v910 = vadd.f32 0.0, %v909
        %v911 = vpop.f32.mrb[0].mxu0
        %v912 = vpop.f32.mrb[0].mxu0
        %v913 = vpop.f32.mrb[0].mxu0
        %914 = vdwg.mxu0
        %v915 = vsel %vm183, %v910, -1000000.0
        %v916 = vsel %vm364, %v915, -inf
        %917 = vmax.xlane.f32.xlu0 %v916
        %v918 = vpop.xlane.xlu0 %917
        %v919 = vsub.f32 %v915, %v918
        %v920 = vmul.f32 %v919, 1.442695
        %v921 = vpow.pop %v920
        %v922 = vsel %vm364, %v921, 0.0
        %923 = vadd.xlane.f32.xlu0 %v922
        %v924 = vpop.xlane.xlu0 %923
        %v925 = vrcp.pop %v924
        %v926 = vmul.f32 %v921, %v925
        %v927 = vpack.c.bf16 %v926, %v926
        %928 = vrot.lane.b32.xlu0 %v363, 104
        %v929 = vpop.permute.xlu0 %928
        %v931 = vsel %vm364, %v927, 0
        %v934 = vsel %vm427, %v929, 0
        %936 = vmatprep.subr.bf16.mxu0 0
        %937 = vmatpush1.bf16.msra.mxu0 %v934
        %938 = vmatprep.subr.bf16.mxu0 0
        %939 = vmatpush1.bf16.msra.mxu0 0
        %940 = vmatprep.subr.bf16.mxu0 0
        %941 = vmatpush1.bf16.msra.mxu0 0
        %942 = vmatprep.subr.bf16.mxu0 0
        %943 = vmatpush1.bf16.msra.mxu0 0
        %944 = vmatprep.subr.bf16.mxu0 0
        %945 = vmatpush1.bf16.msra.mxu0 0
        %946 = vmatprep.subr.bf16.mxu0 0
        %947 = vmatpush1.bf16.msra.mxu0 0
        %948 = vmatprep.subr.bf16.mxu0 0
        %949 = vmatpush1.bf16.msra.mxu0 0
        %950 = vmatprep.subr.bf16.mxu0 0
        %951 = vmatpush1.bf16.msra.mxu0 0
        %952 = vmatprep.subr.bf16.mxu0 0
        %953 = vmatpush1.bf16.msra.mxu0 0
        %954 = vmatprep.subr.bf16.mxu0 0
        %955 = vmatpush1.bf16.msra.mxu0 0
        %956 = vmatprep.subr.bf16.mxu0 0
        %957 = vmatpush1.bf16.msra.mxu0 0
        %958 = vmatprep.subr.bf16.mxu0 0
        %959 = vmatpush1.bf16.msra.mxu0 0
        %960 = vmatprep.subr.bf16.mxu0 0
        %961 = vmatpush1.bf16.msra.mxu0 0
        %962 = vmatprep.subr.bf16.mxu0 0
        %963 = vmatpush1.bf16.msra.mxu0 0
        %964 = vmatprep.subr.bf16.mxu0 0
        %965 = vmatpush1.bf16.msra.mxu0 0
        %966 = vmatprep.subr.bf16.mxu0 0
        %967 = vmatpush1.bf16.msra.mxu0 0
        %968 = vmatprep.mubr.bf16.mxu0 0
        %969 = vmatmul.mubr.bf16.gmra.mrb[0].mxu0 %v931
        %v970 = vpop.f32.mrb[0].mxu0
        %v971 = vadd.f32 0.0, %v970
        %v972 = vpop.f32.mrb[0].mxu0
        %v973 = vpop.f32.mrb[0].mxu0
        %v974 = vpop.f32.mrb[0].mxu0
        %975 = vdwg.mxu0
        %v976 = vpack.c.bf16 %v971, %v971
        %977 = vrot.lane.b32.xlu0 %v595, 104
        %v978 = vpop.permute.xlu0 %977
        %979 = vrot.lane.b32.xlu0 %v596, 104
        %v980 = vpop.permute.xlu0 %979
        %v982 = vsel %vm364, %v976, 0
        %v985 = vsel %vm364, %v978, 0
        %v988 = vsel %vm364, %v980, 0
        %990 = vmatprep.subr.bf16.mxu0 0
        %991 = vmatpush1.bf16.xpose.msra.mxu0 %v985
        %992 = vmatprep.subr.bf16.mxu0 0
        %993 = vmatpush1.bf16.xpose.msra.mxu0 %v988
        %994 = vmatprep.subr.bf16.mxu0 0
        %995 = vmatpush1.bf16.xpose.msra.mxu0 0
        %996 = vmatprep.subr.bf16.mxu0 0
        %997 = vmatpush1.bf16.xpose.msra.mxu0 0
        %998 = vmatprep.subr.bf16.mxu0 0
        %999 = vmatpush1.bf16.xpose.msra.mxu0 0
        %1000 = vmatprep.subr.bf16.mxu0 0
        %1001 = vmatpush1.bf16.xpose.msra.mxu0 0
        %1002 = vmatprep.subr.bf16.mxu0 0
        %1003 = vmatpush1.bf16.xpose.msra.mxu0 0
        %1004 = vmatprep.subr.bf16.mxu0 0
        %1005 = vmatpush1.bf16.xpose.msra.mxu0 0
        %1006 = vmatprep.subr.bf16.mxu0 0
        %1007 = vmatpush1.bf16.xpose.msra.mxu0 0
        %1008 = vmatprep.subr.bf16.mxu0 0
        %1009 = vmatpush1.bf16.xpose.msra.mxu0 0
        %1010 = vmatprep.subr.bf16.mxu0 0
        %1011 = vmatpush1.bf16.xpose.msra.mxu0 0
        %1012 = vmatprep.subr.bf16.mxu0 0
        %1013 = vmatpush1.bf16.xpose.msra.mxu0 0
        %1014 = vmatprep.subr.bf16.mxu0 0
        %1015 = vmatpush1.bf16.xpose.msra.mxu0 0
        %1016 = vmatprep.subr.bf16.mxu0 0
        %1017 = vmatpush1.bf16.xpose.msra.mxu0 0
        %1018 = vmatprep.subr.bf16.mxu0 0
        %1019 = vmatpush1.bf16.xpose.msra.mxu0 0
        %1020 = vmatprep.subr.bf16.mxu0 0
        %1021 = vmatpush1.bf16.xpose.msra.mxu0 0
        %1022 = vmatprep.mubr.bf16.mxu0 0
        %1023 = vmatmul.mubr.bf16.gmra.mrb[0].mxu0 %v982
        %v1024 = vpop.f32.mrb[0].mxu0
        %v1025 = vadd.f32 0.0, %v1024
        %v1026 = vpop.f32.mrb[0].mxu0
        %v1027 = vpop.f32.mrb[0].mxu0
        %v1028 = vpop.f32.mrb[0].mxu0
        %1029 = vdwg.mxu0
        %v1030 = vadd.f32 %v864, %v1025
        %v1031 = vadd.f32 %v177, %v1030
        %v1032 = vld [vmem:[%s3] sm:$0x1]
        %v1033 = vld [vmem:[%s3 + $0x1] sm:$0x1]
        %v1034 = vsel %vm201, %v1031, 0.0
        %1035 = vadd.xlane.f32.xlu0 %v1034
        %v1036 = vpop.xlane.xlu0 %1035
        %v1037 = vrcp.pop 32.0
        %v1038 = vmul.f32 %v1036, %v1037
        %v1039 = vsub.f32 %v1031, %v1038
        %v1040 = vmul.f32 %v1039, %v1039
        %v1041 = vsel %vm201, %v1040, 0.0
        %1042 = vadd.xlane.f32.xlu0 %v1041
        %v1043 = vpop.xlane.xlu0 %1042
        %v1044 = vmul.f32 %v1043, %v1037
        %v1045 = vadd.f32 %v1044, 1e-05
        %v1046 = vrsqrt.pop %v1045
        %v1047 = vmul.f32 %v1039, %v1046
        %v1048 = vlaneseq
        %v1049 = vshrl.u32 %v1048, 7
        %v1050 = vsub.s32 0, %v1049
        %v1051 = vrot.slane %v1032, %v1050
        %v1052 = vmul.f32 %v1047, %v1051
        %v1053 = vlaneseq
        %v1054 = vshrl.u32 %v1053, 7
        %v1055 = vsub.s32 0, %v1054
        %v1056 = vrot.slane %v1033, %v1055
        %v1057 = vadd.f32 %v1052, %v1056
        %s1058 = sld [smem:[#allocation3 + %s24]]
        %v1059 = vstv %s1058
        %vm1060 = vcmp.lt.s32.totalorder %v182, %v1059
        %v1061 = vpack.c.bf16 %v1057, %v1057
        %v1062 = vpack.c.bf16 %v178, %v178
        %v1063 = vld [vmem:[%s2 + $0x40] sm:$0xf]
        %v1064 = vld [vmem:[%s2 + $0x44] sm:$0xf]
        %v1065 = vld [vmem:[%s2 + $0x48] sm:$0xf]
        %v1066 = vld [vmem:[%s2 + $0x4c] sm:$0xf]
        %v1071 = vunpack.c.l.b16 %v1063
        %v1072 = vunpack.c.l.b16 %v1064
        %v1073 = vunpack.c.l.b16 %v1065
        %v1074 = vunpack.c.l.b16 %v1066
        %v1075 = vpack.c.b16 %v1072, %v1071
        %v1076 = vpack.c.b16 %v1074, %v1073
        %v1080 = vsel %vm201, %v1061, 0
        %1082 = vmatprep.subr.bf16.mxu0 0
        %1083 = vmatpush1.bf16.msra.mxu0 %v1075
        %1084 = vmatprep.subr.bf16.mxu0 0
        %1085 = vmatpush1.bf16.msra.mxu0 %v1076
        %1086 = vmatprep.subr.bf16.mxu0 0
        %1087 = vmatpush1.bf16.msra.mxu0 0
        %1088 = vmatprep.subr.bf16.mxu0 0
        %1089 = vmatpush1.bf16.msra.mxu0 0
        %1090 = vmatprep.subr.bf16.mxu0 0
        %1091 = vmatpush1.bf16.msra.mxu0 0
        %1092 = vmatprep.subr.bf16.mxu0 0
        %1093 = vmatpush1.bf16.msra.mxu0 0
        %1094 = vmatprep.subr.bf16.mxu0 0
        %1095 = vmatpush1.bf16.msra.mxu0 0
        %1096 = vmatprep.subr.bf16.mxu0 0
        %1097 = vmatpush1.bf16.msra.mxu0 0
        %1098 = vmatprep.subr.bf16.mxu0 0
        %1099 = vmatpush1.bf16.msra.mxu0 0
        %1100 = vmatprep.subr.bf16.mxu0 0
        %1101 = vmatpush1.bf16.msra.mxu0 0
        %1102 = vmatprep.subr.bf16.mxu0 0
        %1103 = vmatpush1.bf16.msra.mxu0 0
        %1104 = vmatprep.subr.bf16.mxu0 0
        %1105 = vmatpush1.bf16.msra.mxu0 0
        %1106 = vmatprep.subr.bf16.mxu0 0
        %1107 = vmatpush1.bf16.msra.mxu0 0
        %1108 = vmatprep.subr.bf16.mxu0 0
        %1109 = vmatpush1.bf16.msra.mxu0 0
        %1110 = vmatprep.subr.bf16.mxu0 0
        %1111 = vmatpush1.bf16.msra.mxu0 0
        %1112 = vmatprep.subr.bf16.mxu0 0
        %1113 = vmatpush1.bf16.msra.mxu0 0
        %1114 = vmatprep.mubr.bf16.mxu0 0
        %1115 = vmatmul.mubr.bf16.gmra.mrb[0].mxu0 %v1080
        %v1116 = vpop.f32.mrb[0].mxu0
        %v1117 = vadd.f32 0.0, %v1116
        %v1118 = vpop.f32.mrb[0].mxu0
        %v1119 = vpop.f32.mrb[0].mxu0
        %v1120 = vpop.f32.mrb[0].mxu0
        %1121 = vdwg.mxu0
        %v1122 = vld [vmem:[%s2 + $0x50] sm:$0xf]
        %v1123 = vld [vmem:[%s2 + $0x54] sm:$0xf]
        %v1124 = vld [vmem:[%s2 + $0x58] sm:$0xf]
        %v1125 = vld [vmem:[%s2 + $0x5c] sm:$0xf]
        %v1130 = vunpack.c.l.b16 %v1122
        %v1131 = vunpack.c.l.b16 %v1123
        %v1132 = vunpack.c.l.b16 %v1124
        %v1133 = vunpack.c.l.b16 %v1125
        %v1134 = vpack.c.b16 %v1131, %v1130
        %v1135 = vpack.c.b16 %v1133, %v1132
        %v1139 = vsel %vm201, %v1062, 0
        %1141 = vmatprep.subr.bf16.mxu0 0
        %1142 = vmatpush1.bf16.msra.mxu0 %v1134
        %1143 = vmatprep.subr.bf16.mxu0 0
        %1144 = vmatpush1.bf16.msra.mxu0 %v1135
        %1145 = vmatprep.subr.bf16.mxu0 0
        %1146 = vmatpush1.bf16.msra.mxu0 0
        %1147 = vmatprep.subr.bf16.mxu0 0
        %1148 = vmatpush1.bf16.msra.mxu0 0
        %1149 = vmatprep.subr.bf16.mxu0 0
        %1150 = vmatpush1.bf16.msra.mxu0 0
        %1151 = vmatprep.subr.bf16.mxu0 0
        %1152 = vmatpush1.bf16.msra.mxu0 0
        %1153 = vmatprep.subr.bf16.mxu0 0
        %1154 = vmatpush1.bf16.msra.mxu0 0
        %1155 = vmatprep.subr.bf16.mxu0 0
        %1156 = vmatpush1.bf16.msra.mxu0 0
        %1157 = vmatprep.subr.bf16.mxu0 0
        %1158 = vmatpush1.bf16.msra.mxu0 0
        %1159 = vmatprep.subr.bf16.mxu0 0
        %1160 = vmatpush1.bf16.msra.mxu0 0
        %1161 = vmatprep.subr.bf16.mxu0 0
        %1162 = vmatpush1.bf16.msra.mxu0 0
        %1163 = vmatprep.subr.bf16.mxu0 0
        %1164 = vmatpush1.bf16.msra.mxu0 0
        %1165 = vmatprep.subr.bf16.mxu0 0
        %1166 = vmatpush1.bf16.msra.mxu0 0
        %1167 = vmatprep.subr.bf16.mxu0 0
        %1168 = vmatpush1.bf16.msra.mxu0 0
        %1169 = vmatprep.subr.bf16.mxu0 0
        %1170 = vmatpush1.bf16.msra.mxu0 0
        %1171 = vmatprep.subr.bf16.mxu0 0
        %1172 = vmatpush1.bf16.msra.mxu0 0
        %1173 = vmatprep.mubr.bf16.mxu0 0
        %1174 = vmatmul.mubr.bf16.gmra.mrb[0].mxu0 %v1139
        %v1175 = vpop.f32.mrb[0].mxu0
        %v1176 = vadd.f32 0.0, %v1175
        %v1177 = vpop.f32.mrb[0].mxu0
        %v1178 = vpop.f32.mrb[0].mxu0
        %v1179 = vpop.f32.mrb[0].mxu0
        %1180 = vdwg.mxu0
        %v1181 = vld [vmem:[%s2 + $0x60] sm:$0xf]
        %v1182 = vld [vmem:[%s2 + $0x64] sm:$0xf]
        %v1183 = vld [vmem:[%s2 + $0x68] sm:$0xf]
        %v1184 = vld [vmem:[%s2 + $0x6c] sm:$0xf]
        %v1189 = vunpack.c.l.b16 %v1181
        %v1190 = vunpack.c.l.b16 %v1182
        %v1191 = vunpack.c.l.b16 %v1183
        %v1192 = vunpack.c.l.b16 %v1184
        %v1193 = vpack.c.b16 %v1190, %v1189
        %v1194 = vpack.c.b16 %v1192, %v1191
        %1197 = vmatprep.subr.bf16.mxu0 0
        %1198 = vmatpush1.bf16.msra.mxu0 %v1193
        %1199 = vmatprep.subr.bf16.mxu0 0
        %1200 = vmatpush1.bf16.msra.mxu0 %v1194
        %1201 = vmatprep.subr.bf16.mxu0 0
        %1202 = vmatpush1.bf16.msra.mxu0 0
        %1203 = vmatprep.subr.bf16.mxu0 0
        %1204 = vmatpush1.bf16.msra.mxu0 0
        %1205 = vmatprep.subr.bf16.mxu0 0
        %1206 = vmatpush1.bf16.msra.mxu0 0
        %1207 = vmatprep.subr.bf16.mxu0 0
        %1208 = vmatpush1.bf16.msra.mxu0 0
        %1209 = vmatprep.subr.bf16.mxu0 0
        %1210 = vmatpush1.bf16.msra.mxu0 0
        %1211 = vmatprep.subr.bf16.mxu0 0
        %1212 = vmatpush1.bf16.msra.mxu0 0
        %1213 = vmatprep.subr.bf16.mxu0 0
        %1214 = vmatpush1.bf16.msra.mxu0 0
        %1215 = vmatprep.subr.bf16.mxu0 0
        %1216 = vmatpush1.bf16.msra.mxu0 0
        %1217 = vmatprep.subr.bf16.mxu0 0
        %1218 = vmatpush1.bf16.msra.mxu0 0
        %1219 = vmatprep.subr.bf16.mxu0 0
        %1220 = vmatpush1.bf16.msra.mxu0 0
        %1221 = vmatprep.subr.bf16.mxu0 0
        %1222 = vmatpush1.bf16.msra.mxu0 0
        %1223 = vmatprep.subr.bf16.mxu0 0
        %1224 = vmatpush1.bf16.msra.mxu0 0
        %1225 = vmatprep.subr.bf16.mxu0 0
        %1226 = vmatpush1.bf16.msra.mxu0 0
        %1227 = vmatprep.subr.bf16.mxu0 0
        %1228 = vmatpush1.bf16.msra.mxu0 0
        %1229 = vmatprep.mubr.bf16.mxu0 0
        %1230 = vmatmul.mubr.bf16.gmra.mrb[0].mxu0 %v1139
        %v1231 = vpop.f32.mrb[0].mxu0
        %v1232 = vadd.f32 0.0, %v1231
        %v1233 = vpop.f32.mrb[0].mxu0
        %v1234 = vpop.f32.mrb[0].mxu0
        %v1235 = vpop.f32.mrb[0].mxu0
        %1236 = vdwg.mxu0
        %v1237 = vld [vmem:[%s2 + $0x70] sm:$0xf]
        %v1238 = vld [vmem:[%s2 + $0x74] sm:$0xf]
        %v1239 = vld [vmem:[%s2 + $0x78] sm:$0xf]
        %v1240 = vld [vmem:[%s2 + $0x7c] sm:$0xf]
        %v1241 = vpack.c.bf16 %v1117, %v1117
        %v1242 = vpack.c.bf16 %v1176, %v1176
        %v1243 = vpack.c.bf16 %v1232, %v1232
        %v1245 = vsel %vm364, %v1241, 0
        %v1248 = vsel %vm364, %v1242, 0
        %1250 = vmatprep.subr.bf16.mxu0 0
        %1251 = vmatpush1.bf16.xpose.msra.mxu0 %v1248
        %1252 = vmatprep.subr.bf16.mxu0 0
        %1253 = vmatpush1.bf16.xpose.msra.mxu0 0
        %1254 = vmatprep.subr.bf16.mxu0 0
        %1255 = vmatpush1.bf16.xpose.msra.mxu0 0
        %1256 = vmatprep.subr.bf16.mxu0 0
        %1257 = vmatpush1.bf16.xpose.msra.mxu0 0
        %1258 = vmatprep.subr.bf16.mxu0 0
        %1259 = vmatpush1.bf16.xpose.msra.mxu0 0
        %1260 = vmatprep.subr.bf16.mxu0 0
        %1261 = vmatpush1.bf16.xpose.msra.mxu0 0
        %1262 = vmatprep.subr.bf16.mxu0 0
        %1263 = vmatpush1.bf16.xpose.msra.mxu0 0
        %1264 = vmatprep.subr.bf16.mxu0 0
        %1265 = vmatpush1.bf16.xpose.msra.mxu0 0
        %1266 = vmatprep.subr.bf16.mxu0 0
        %1267 = vmatpush1.bf16.xpose.msra.mxu0 0
        %1268 = vmatprep.subr.bf16.mxu0 0
        %1269 = vmatpush1.bf16.xpose.msra.mxu0 0
        %1270 = vmatprep.subr.bf16.mxu0 0
        %1271 = vmatpush1.bf16.xpose.msra.mxu0 0
        %1272 = vmatprep.subr.bf16.mxu0 0
        %1273 = vmatpush1.bf16.xpose.msra.mxu0 0
        %1274 = vmatprep.subr.bf16.mxu0 0
        %1275 = vmatpush1.bf16.xpose.msra.mxu0 0
        %1276 = vmatprep.subr.bf16.mxu0 0
        %1277 = vmatpush1.bf16.xpose.msra.mxu0 0
        %1278 = vmatprep.subr.bf16.mxu0 0
        %1279 = vmatpush1.bf16.xpose.msra.mxu0 0
        %1280 = vmatprep.subr.bf16.mxu0 0
        %1281 = vmatpush1.bf16.xpose.msra.mxu0 0
        %1282 = vmatprep.mubr.bf16.mxu0 0
        %1283 = vmatmul.mubr.bf16.gmra.mrb[0].mxu0 %v1245
        %v1284 = vpop.f32.mrb[0].mxu0
        %v1285 = vadd.f32 0.0, %v1284
        %v1286 = vpop.f32.mrb[0].mxu0
        %v1287 = vpop.f32.mrb[0].mxu0
        %v1288 = vpop.f32.mrb[0].mxu0
        %1289 = vdwg.mxu0
        %v1290 = vsel %vm1060, %v1285, -1000000.0
        %v1291 = vsel %vm364, %v1290, -inf
        %1292 = vmax.xlane.f32.xlu0 %v1291
        %v1293 = vpop.xlane.xlu0 %1292
        %v1294 = vsub.f32 %v1290, %v1293
        %v1295 = vmul.f32 %v1294, 1.442695
        %v1296 = vpow.pop %v1295
        %v1297 = vsel %vm364, %v1296, 0.0
        %1298 = vadd.xlane.f32.xlu0 %v1297
        %v1299 = vpop.xlane.xlu0 %1298
        %v1300 = vrcp.pop %v1299
        %v1301 = vmul.f32 %v1296, %v1300
        %v1302 = vpack.c.bf16 %v1301, %v1301
        %v1304 = vsel %vm364, %v1302, 0
        %v1307 = vsel %vm427, %v1243, 0
        %1309 = vmatprep.subr.bf16.mxu0 0
        %1310 = vmatpush1.bf16.msra.mxu0 %v1307
        %1311 = vmatprep.subr.bf16.mxu0 0
        %1312 = vmatpush1.bf16.msra.mxu0 0
        %1313 = vmatprep.subr.bf16.mxu0 0
        %1314 = vmatpush1.bf16.msra.mxu0 0
        %1315 = vmatprep.subr.bf16.mxu0 0
        %1316 = vmatpush1.bf16.msra.mxu0 0
        %1317 = vmatprep.subr.bf16.mxu0 0
        %1318 = vmatpush1.bf16.msra.mxu0 0
        %1319 = vmatprep.subr.bf16.mxu0 0
        %1320 = vmatpush1.bf16.msra.mxu0 0
        %1321 = vmatprep.subr.bf16.mxu0 0
        %1322 = vmatpush1.bf16.msra.mxu0 0
        %1323 = vmatprep.subr.bf16.mxu0 0
        %1324 = vmatpush1.bf16.msra.mxu0 0
        %1325 = vmatprep.subr.bf16.mxu0 0
        %1326 = vmatpush1.bf16.msra.mxu0 0
        %1327 = vmatprep.subr.bf16.mxu0 0
        %1328 = vmatpush1.bf16.msra.mxu0 0
        %1329 = vmatprep.subr.bf16.mxu0 0
        %1330 = vmatpush1.bf16.msra.mxu0 0
        %1331 = vmatprep.subr.bf16.mxu0 0
        %1332 = vmatpush1.bf16.msra.mxu0 0
        %1333 = vmatprep.subr.bf16.mxu0 0
        %1334 = vmatpush1.bf16.msra.mxu0 0
        %1335 = vmatprep.subr.bf16.mxu0 0
        %1336 = vmatpush1.bf16.msra.mxu0 0
        %1337 = vmatprep.subr.bf16.mxu0 0
        %1338 = vmatpush1.bf16.msra.mxu0 0
        %1339 = vmatprep.subr.bf16.mxu0 0
        %1340 = vmatpush1.bf16.msra.mxu0 0
        %1341 = vmatprep.mubr.bf16.mxu0 0
        %1342 = vmatmul.mubr.bf16.gmra.mrb[0].mxu0 %v1304
        %v1343 = vpop.f32.mrb[0].mxu0
        %v1344 = vadd.f32 0.0, %v1343
        %v1345 = vpop.f32.mrb[0].mxu0
        %v1346 = vpop.f32.mrb[0].mxu0
        %v1347 = vpop.f32.mrb[0].mxu0
        %1348 = vdwg.mxu0
        %v1349 = vpack.c.bf16 %v1344, %v1344
        %1351 = vrot.lane.b32.xlu0 %v1241, 120
        %v1352 = vpop.permute.xlu0 %1351
        %1354 = vrot.lane.b32.xlu0 %v1242, 120
        %v1355 = vpop.permute.xlu0 %1354
        %v1357 = vsel %vm364, %v1352, 0
        %v1360 = vsel %vm364, %v1355, 0
        %1362 = vmatprep.subr.bf16.mxu0 0
        %1363 = vmatpush1.bf16.xpose.msra.mxu0 %v1360
        %1364 = vmatprep.subr.bf16.mxu0 0
        %1365 = vmatpush1.bf16.xpose.msra.mxu0 0
        %1366 = vmatprep.subr.bf16.mxu0 0
        %1367 = vmatpush1.bf16.xpose.msra.mxu0 0
        %1368 = vmatprep.subr.bf16.mxu0 0
        %1369 = vmatpush1.bf16.xpose.msra.mxu0 0
        %1370 = vmatprep.subr.bf16.mxu0 0
        %1371 = vmatpush1.bf16.xpose.msra.mxu0 0
        %1372 = vmatprep.subr.bf16.mxu0 0
        %1373 = vmatpush1.bf16.xpose.msra.mxu0 0
        %1374 = vmatprep.subr.bf16.mxu0 0
        %1375 = vmatpush1.bf16.xpose.msra.mxu0 0
        %1376 = vmatprep.subr.bf16.mxu0 0
        %1377 = vmatpush1.bf16.xpose.msra.mxu0 0
        %1378 = vmatprep.subr.bf16.mxu0 0
        %1379 = vmatpush1.bf16.xpose.msra.mxu0 0
        %1380 = vmatprep.subr.bf16.mxu0 0
        %1381 = vmatpush1.bf16.xpose.msra.mxu0 0
        %1382 = vmatprep.subr.bf16.mxu0 0
        %1383 = vmatpush1.bf16.xpose.msra.mxu0 0
        %1384 = vmatprep.subr.bf16.mxu0 0
        %1385 = vmatpush1.bf16.xpose.msra.mxu0 0
        %1386 = vmatprep.subr.bf16.mxu0 0
        %1387 = vmatpush1.bf16.xpose.msra.mxu0 0
        %1388 = vmatprep.subr.bf16.mxu0 0
        %1389 = vmatpush1.bf16.xpose.msra.mxu0 0
        %1390 = vmatprep.subr.bf16.mxu0 0
        %1391 = vmatpush1.bf16.xpose.msra.mxu0 0
        %1392 = vmatprep.subr.bf16.mxu0 0
        %1393 = vmatpush1.bf16.xpose.msra.mxu0 0
        %1394 = vmatprep.mubr.bf16.mxu0 0
        %1395 = vmatmul.mubr.bf16.gmra.mrb[0].mxu0 %v1357
        %v1396 = vpop.f32.mrb[0].mxu0
        %v1397 = vadd.f32 0.0, %v1396
        %v1398 = vpop.f32.mrb[0].mxu0
        %v1399 = vpop.f32.mrb[0].mxu0
        %v1400 = vpop.f32.mrb[0].mxu0
        %1401 = vdwg.mxu0
        %v1402 = vsel %vm1060, %v1397, -1000000.0
        %v1403 = vsel %vm364, %v1402, -inf
        %1404 = vmax.xlane.f32.xlu0 %v1403
        %v1405 = vpop.xlane.xlu0 %1404
        %v1406 = vsub.f32 %v1402, %v1405
        %v1407 = vmul.f32 %v1406, 1.442695
        %v1408 = vpow.pop %v1407
        %v1409 = vsel %vm364, %v1408, 0.0
        %1410 = vadd.xlane.f32.xlu0 %v1409
        %v1411 = vpop.xlane.xlu0 %1410
        %v1412 = vrcp.pop %v1411
        %v1413 = vmul.f32 %v1408, %v1412
        %v1414 = vpack.c.bf16 %v1413, %v1413
        %1416 = vrot.lane.b32.xlu0 %v1243, 120
        %v1417 = vpop.permute.xlu0 %1416
        %v1419 = vsel %vm364, %v1414, 0
        %v1422 = vsel %vm427, %v1417, 0
        %1424 = vmatprep.subr.bf16.mxu0 0
        %1425 = vmatpush1.bf16.msra.mxu0 %v1422
        %1426 = vmatprep.subr.bf16.mxu0 0
        %1427 = vmatpush1.bf16.msra.mxu0 0
        %1428 = vmatprep.subr.bf16.mxu0 0
        %1429 = vmatpush1.bf16.msra.mxu0 0
        %1430 = vmatprep.subr.bf16.mxu0 0
        %1431 = vmatpush1.bf16.msra.mxu0 0
        %1432 = vmatprep.subr.bf16.mxu0 0
        %1433 = vmatpush1.bf16.msra.mxu0 0
        %1434 = vmatprep.subr.bf16.mxu0 0
        %1435 = vmatpush1.bf16.msra.mxu0 0
        %1436 = vmatprep.subr.bf16.mxu0 0
        %1437 = vmatpush1.bf16.msra.mxu0 0
        %1438 = vmatprep.subr.bf16.mxu0 0
        %1439 = vmatpush1.bf16.msra.mxu0 0
        %1440 = vmatprep.subr.bf16.mxu0 0
        %1441 = vmatpush1.bf16.msra.mxu0 0
        %1442 = vmatprep.subr.bf16.mxu0 0
        %1443 = vmatpush1.bf16.msra.mxu0 0
        %1444 = vmatprep.subr.bf16.mxu0 0
        %1445 = vmatpush1.bf16.msra.mxu0 0
        %1446 = vmatprep.subr.bf16.mxu0 0
        %1447 = vmatpush1.bf16.msra.mxu0 0
        %1448 = vmatprep.subr.bf16.mxu0 0
        %1449 = vmatpush1.bf16.msra.mxu0 0
        %1450 = vmatprep.subr.bf16.mxu0 0
        %1451 = vmatpush1.bf16.msra.mxu0 0
        %1452 = vmatprep.subr.bf16.mxu0 0
        %1453 = vmatpush1.bf16.msra.mxu0 0
        %1454 = vmatprep.subr.bf16.mxu0 0
        %1455 = vmatpush1.bf16.msra.mxu0 0
        %1456 = vmatprep.mubr.bf16.mxu0 0
        %1457 = vmatmul.mubr.bf16.gmra.mrb[0].mxu0 %v1419
        %v1458 = vpop.f32.mrb[0].mxu0
        %v1459 = vadd.f32 0.0, %v1458
        %v1460 = vpop.f32.mrb[0].mxu0
        %v1461 = vpop.f32.mrb[0].mxu0
        %v1462 = vpop.f32.mrb[0].mxu0
        %1463 = vdwg.mxu0
        %v1464 = vpack.c.bf16 %v1459, %v1459
        %v1469 = vunpack.c.l.b16 %v1237
        %v1470 = vunpack.c.l.b16 %v1238
        %v1471 = vunpack.c.l.b16 %v1239
        %v1472 = vunpack.c.l.b16 %v1240
        %v1473 = vpack.c.b16 %v1470, %v1469
        %v1474 = vpack.c.b16 %v1472, %v1471
        %1475 = vrot.lane.b32.xlu0 %v1473, 120
        %v1476 = vpop.permute.xlu0 %1475
        %1477 = vrot.lane.b32.xlu0 %v1474, 120
        %v1478 = vpop.permute.xlu0 %1477
        %v1480 = vsel %vm364, %v1464, 0
        %v1483 = vsel %vm364, %v1476, 0
        %v1486 = vsel %vm364, %v1478, 0
        %1488 = vmatprep.subr.bf16.mxu0 0
        %1489 = vmatpush1.bf16.xpose.msra.mxu0 %v1483
        %1490 = vmatprep.subr.bf16.mxu0 0
        %1491 = vmatpush1.bf16.xpose.msra.mxu0 %v1486
        %1492 = vmatprep.subr.bf16.mxu0 0
        %1493 = vmatpush1.bf16.xpose.msra.mxu0 0
        %1494 = vmatprep.subr.bf16.mxu0 0
        %1495 = vmatpush1.bf16.xpose.msra.mxu0 0
        %1496 = vmatprep.subr.bf16.mxu0 0
        %1497 = vmatpush1.bf16.xpose.msra.mxu0 0
        %1498 = vmatprep.subr.bf16.mxu0 0
        %1499 = vmatpush1.bf16.xpose.msra.mxu0 0
        %1500 = vmatprep.subr.bf16.mxu0 0
        %1501 = vmatpush1.bf16.xpose.msra.mxu0 0
        %1502 = vmatprep.subr.bf16.mxu0 0
        %1503 = vmatpush1.bf16.xpose.msra.mxu0 0
        %1504 = vmatprep.subr.bf16.mxu0 0
        %1505 = vmatpush1.bf16.xpose.msra.mxu0 0
        %1506 = vmatprep.subr.bf16.mxu0 0
        %1507 = vmatpush1.bf16.xpose.msra.mxu0 0
        %1508 = vmatprep.subr.bf16.mxu0 0
        %1509 = vmatpush1.bf16.xpose.msra.mxu0 0
        %1510 = vmatprep.subr.bf16.mxu0 0
        %1511 = vmatpush1.bf16.xpose.msra.mxu0 0
        %1512 = vmatprep.subr.bf16.mxu0 0
        %1513 = vmatpush1.bf16.xpose.msra.mxu0 0
        %1514 = vmatprep.subr.bf16.mxu0 0
        %1515 = vmatpush1.bf16.xpose.msra.mxu0 0
        %1516 = vmatprep.subr.bf16.mxu0 0
        %1517 = vmatpush1.bf16.xpose.msra.mxu0 0
        %1518 = vmatprep.subr.bf16.mxu0 0
        %1519 = vmatpush1.bf16.xpose.msra.mxu0 0
        %1520 = vmatprep.mubr.bf16.mxu0 0
        %1521 = vmatmul.mubr.bf16.gmra.mrb[0].mxu0 %v1480
        %v1522 = vpop.f32.mrb[0].mxu0
        %v1523 = vadd.f32 0.0, %v1522
        %v1524 = vpop.f32.mrb[0].mxu0
        %v1525 = vpop.f32.mrb[0].mxu0
        %v1526 = vpop.f32.mrb[0].mxu0
        %1527 = vdwg.mxu0
        %v1529 = vsel %vm364, %v1349, 0
        %v1532 = vsel %vm364, %v1473, 0
        %v1535 = vsel %vm364, %v1474, 0
        %1537 = vmatprep.subr.bf16.mxu0 0
        %1538 = vmatpush1.bf16.xpose.msra.mxu0 %v1532
        %1539 = vmatprep.subr.bf16.mxu0 0
        %1540 = vmatpush1.bf16.xpose.msra.mxu0 %v1535
        %1541 = vmatprep.subr.bf16.mxu0 0
        %1542 = vmatpush1.bf16.xpose.msra.mxu0 0
        %1543 = vmatprep.subr.bf16.mxu0 0
        %1544 = vmatpush1.bf16.xpose.msra.mxu0 0
        %1545 = vmatprep.subr.bf16.mxu0 0
        %1546 = vmatpush1.bf16.xpose.msra.mxu0 0
        %1547 = vmatprep.subr.bf16.mxu0 0
        %1548 = vmatpush1.bf16.xpose.msra.mxu0 0
        %1549 = vmatprep.subr.bf16.mxu0 0
        %1550 = vmatpush1.bf16.xpose.msra.mxu0 0
        %1551 = vmatprep.subr.bf16.mxu0 0
        %1552 = vmatpush1.bf16.xpose.msra.mxu0 0
        %1553 = vmatprep.subr.bf16.mxu0 0
        %1554 = vmatpush1.bf16.xpose.msra.mxu0 0
        %1555 = vmatprep.subr.bf16.mxu0 0
        %1556 = vmatpush1.bf16.xpose.msra.mxu0 0
        %1557 = vmatprep.subr.bf16.mxu0 0
        %1558 = vmatpush1.bf16.xpose.msra.mxu0 0
        %1559 = vmatprep.subr.bf16.mxu0 0
        %1560 = vmatpush1.bf16.xpose.msra.mxu0 0
        %1561 = vmatprep.subr.bf16.mxu0 0
        %1562 = vmatpush1.bf16.xpose.msra.mxu0 0
        %1563 = vmatprep.subr.bf16.mxu0 0
        %1564 = vmatpush1.bf16.xpose.msra.mxu0 0
        %1565 = vmatprep.subr.bf16.mxu0 0
        %1566 = vmatpush1.bf16.xpose.msra.mxu0 0
        %1567 = vmatprep.subr.bf16.mxu0 0
        %1568 = vmatpush1.bf16.xpose.msra.mxu0 0
        %1569 = vmatprep.mubr.bf16.mxu0 0
        %1570 = vmatmul.mubr.bf16.gmra.mrb[0].mxu0 %v1529
        %v1571 = vpop.f32.mrb[0].mxu0
        %v1572 = vadd.f32 %v1523, %v1571
        %v1573 = vpop.f32.mrb[0].mxu0
        %v1574 = vpop.f32.mrb[0].mxu0
        %v1575 = vpop.f32.mrb[0].mxu0
        %1576 = vdwg.mxu0
        %1577 = vrot.lane.b32.xlu0 %v1241, 112
        %v1578 = vpop.permute.xlu0 %1577
        %1579 = vrot.lane.b32.xlu0 %v1242, 112
        %v1580 = vpop.permute.xlu0 %1579
        %v1582 = vsel %vm364, %v1578, 0
        %v1585 = vsel %vm364, %v1580, 0
        %1587 = vmatprep.subr.bf16.mxu0 0
        %1588 = vmatpush1.bf16.xpose.msra.mxu0 %v1585
        %1589 = vmatprep.subr.bf16.mxu0 0
        %1590 = vmatpush1.bf16.xpose.msra.mxu0 0
        %1591 = vmatprep.subr.bf16.mxu0 0
        %1592 = vmatpush1.bf16.xpose.msra.mxu0 0
        %1593 = vmatprep.subr.bf16.mxu0 0
        %1594 = vmatpush1.bf16.xpose.msra.mxu0 0
        %1595 = vmatprep.subr.bf16.mxu0 0
        %1596 = vmatpush1.bf16.xpose.msra.mxu0 0
        %1597 = vmatprep.subr.bf16.mxu0 0
        %1598 = vmatpush1.bf16.xpose.msra.mxu0 0
        %1599 = vmatprep.subr.bf16.mxu0 0
        %1600 = vmatpush1.bf16.xpose.msra.mxu0 0
        %1601 = vmatprep.subr.bf16.mxu0 0
        %1602 = vmatpush1.bf16.xpose.msra.mxu0 0
        %1603 = vmatprep.subr.bf16.mxu0 0
        %1604 = vmatpush1.bf16.xpose.msra.mxu0 0
        %1605 = vmatprep.subr.bf16.mxu0 0
        %1606 = vmatpush1.bf16.xpose.msra.mxu0 0
        %1607 = vmatprep.subr.bf16.mxu0 0
        %1608 = vmatpush1.bf16.xpose.msra.mxu0 0
        %1609 = vmatprep.subr.bf16.mxu0 0
        %1610 = vmatpush1.bf16.xpose.msra.mxu0 0
        %1611 = vmatprep.subr.bf16.mxu0 0
        %1612 = vmatpush1.bf16.xpose.msra.mxu0 0
        %1613 = vmatprep.subr.bf16.mxu0 0
        %1614 = vmatpush1.bf16.xpose.msra.mxu0 0
        %1615 = vmatprep.subr.bf16.mxu0 0
        %1616 = vmatpush1.bf16.xpose.msra.mxu0 0
        %1617 = vmatprep.subr.bf16.mxu0 0
        %1618 = vmatpush1.bf16.xpose.msra.mxu0 0
        %1619 = vmatprep.mubr.bf16.mxu0 0
        %1620 = vmatmul.mubr.bf16.gmra.mrb[0].mxu0 %v1582
        %v1621 = vpop.f32.mrb[0].mxu0
        %v1622 = vadd.f32 0.0, %v1621
        %v1623 = vpop.f32.mrb[0].mxu0
        %v1624 = vpop.f32.mrb[0].mxu0
        %v1625 = vpop.f32.mrb[0].mxu0
        %1626 = vdwg.mxu0
        %v1627 = vsel %vm1060, %v1622, -1000000.0
        %v1628 = vsel %vm364, %v1627, -inf
        %1629 = vmax.xlane.f32.xlu0 %v1628
        %v1630 = vpop.xlane.xlu0 %1629
        %v1631 = vsub.f32 %v1627, %v1630
        %v1632 = vmul.f32 %v1631, 1.442695
        %v1633 = vpow.pop %v1632
        %v1634 = vsel %vm364, %v1633, 0.0
        %1635 = vadd.xlane.f32.xlu0 %v1634
        %v1636 = vpop.xlane.xlu0 %1635
        %v1637 = vrcp.pop %v1636
        %v1638 = vmul.f32 %v1633, %v1637
        %v1639 = vpack.c.bf16 %v1638, %v1638
        %1640 = vrot.lane.b32.xlu0 %v1243, 112
        %v1641 = vpop.permute.xlu0 %1640
        %v1643 = vsel %vm364, %v1639, 0
        %v1646 = vsel %vm427, %v1641, 0
        %1648 = vmatprep.subr.bf16.mxu0 0
        %1649 = vmatpush1.bf16.msra.mxu0 %v1646
        %1650 = vmatprep.subr.bf16.mxu0 0
        %1651 = vmatpush1.bf16.msra.mxu0 0
        %1652 = vmatprep.subr.bf16.mxu0 0
        %1653 = vmatpush1.bf16.msra.mxu0 0
        %1654 = vmatprep.subr.bf16.mxu0 0
        %1655 = vmatpush1.bf16.msra.mxu0 0
        %1656 = vmatprep.subr.bf16.mxu0 0
        %1657 = vmatpush1.bf16.msra.mxu0 0
        %1658 = vmatprep.subr.bf16.mxu0 0
        %1659 = vmatpush1.bf16.msra.mxu0 0
        %1660 = vmatprep.subr.bf16.mxu0 0
        %1661 = vmatpush1.bf16.msra.mxu0 0
        %1662 = vmatprep.subr.bf16.mxu0 0
        %1663 = vmatpush1.bf16.msra.mxu0 0
        %1664 = vmatprep.subr.bf16.mxu0 0
        %1665 = vmatpush1.bf16.msra.mxu0 0
        %1666 = vmatprep.subr.bf16.mxu0 0
        %1667 = vmatpush1.bf16.msra.mxu0 0
        %1668 = vmatprep.subr.bf16.mxu0 0
        %1669 = vmatpush1.bf16.msra.mxu0 0
        %1670 = vmatprep.subr.bf16.mxu0 0
        %1671 = vmatpush1.bf16.msra.mxu0 0
        %1672 = vmatprep.subr.bf16.mxu0 0
        %1673 = vmatpush1.bf16.msra.mxu0 0
        %1674 = vmatprep.subr.bf16.mxu0 0
        %1675 = vmatpush1.bf16.msra.mxu0 0
        %1676 = vmatprep.subr.bf16.mxu0 0
        %1677 = vmatpush1.bf16.msra.mxu0 0
        %1678 = vmatprep.subr.bf16.mxu0 0
        %1679 = vmatpush1.bf16.msra.mxu0 0
        %1680 = vmatprep.mubr.bf16.mxu0 0
        %1681 = vmatmul.mubr.bf16.gmra.mrb[0].mxu0 %v1643
        %v1682 = vpop.f32.mrb[0].mxu0
        %v1683 = vadd.f32 0.0, %v1682
        %v1684 = vpop.f32.mrb[0].mxu0
        %v1685 = vpop.f32.mrb[0].mxu0
        %v1686 = vpop.f32.mrb[0].mxu0
        %1687 = vdwg.mxu0
        %v1688 = vpack.c.bf16 %v1683, %v1683
        %1689 = vrot.lane.b32.xlu0 %v1473, 112
        %v1690 = vpop.permute.xlu0 %1689
        %1691 = vrot.lane.b32.xlu0 %v1474, 112
        %v1692 = vpop.permute.xlu0 %1691
        %v1694 = vsel %vm364, %v1688, 0
        %v1697 = vsel %vm364, %v1690, 0
        %v1700 = vsel %vm364, %v1692, 0
        %1702 = vmatprep.subr.bf16.mxu0 0
        %1703 = vmatpush1.bf16.xpose.msra.mxu0 %v1697
        %1704 = vmatprep.subr.bf16.mxu0 0
        %1705 = vmatpush1.bf16.xpose.msra.mxu0 %v1700
        %1706 = vmatprep.subr.bf16.mxu0 0
        %1707 = vmatpush1.bf16.xpose.msra.mxu0 0
        %1708 = vmatprep.subr.bf16.mxu0 0
        %1709 = vmatpush1.bf16.xpose.msra.mxu0 0
        %1710 = vmatprep.subr.bf16.mxu0 0
        %1711 = vmatpush1.bf16.xpose.msra.mxu0 0
        %1712 = vmatprep.subr.bf16.mxu0 0
        %1713 = vmatpush1.bf16.xpose.msra.mxu0 0
        %1714 = vmatprep.subr.bf16.mxu0 0
        %1715 = vmatpush1.bf16.xpose.msra.mxu0 0
        %1716 = vmatprep.subr.bf16.mxu0 0
        %1717 = vmatpush1.bf16.xpose.msra.mxu0 0
        %1718 = vmatprep.subr.bf16.mxu0 0
        %1719 = vmatpush1.bf16.xpose.msra.mxu0 0
        %1720 = vmatprep.subr.bf16.mxu0 0
        %1721 = vmatpush1.bf16.xpose.msra.mxu0 0
        %1722 = vmatprep.subr.bf16.mxu0 0
        %1723 = vmatpush1.bf16.xpose.msra.mxu0 0
        %1724 = vmatprep.subr.bf16.mxu0 0
        %1725 = vmatpush1.bf16.xpose.msra.mxu0 0
        %1726 = vmatprep.subr.bf16.mxu0 0
        %1727 = vmatpush1.bf16.xpose.msra.mxu0 0
        %1728 = vmatprep.subr.bf16.mxu0 0
        %1729 = vmatpush1.bf16.xpose.msra.mxu0 0
        %1730 = vmatprep.subr.bf16.mxu0 0
        %1731 = vmatpush1.bf16.xpose.msra.mxu0 0
        %1732 = vmatprep.subr.bf16.mxu0 0
        %1733 = vmatpush1.bf16.xpose.msra.mxu0 0
        %1734 = vmatprep.mubr.bf16.mxu0 0
        %1735 = vmatmul.mubr.bf16.gmra.mrb[0].mxu0 %v1694
        %v1736 = vpop.f32.mrb[0].mxu0
        %v1737 = vadd.f32 0.0, %v1736
        %v1738 = vpop.f32.mrb[0].mxu0
        %v1739 = vpop.f32.mrb[0].mxu0
        %v1740 = vpop.f32.mrb[0].mxu0
        %1741 = vdwg.mxu0
        %v1742 = vadd.f32 %v1572, %v1737
        %1743 = vrot.lane.b32.xlu0 %v1241, 104
        %v1744 = vpop.permute.xlu0 %1743
        %1745 = vrot.lane.b32.xlu0 %v1242, 104
        %v1746 = vpop.permute.xlu0 %1745
        %v1748 = vsel %vm364, %v1744, 0
        %v1751 = vsel %vm364, %v1746, 0
        %1753 = vmatprep.subr.bf16.mxu0 0
        %1754 = vmatpush1.bf16.xpose.msra.mxu0 %v1751
        %1755 = vmatprep.subr.bf16.mxu0 0
        %1756 = vmatpush1.bf16.xpose.msra.mxu0 0
        %1757 = vmatprep.subr.bf16.mxu0 0
        %1758 = vmatpush1.bf16.xpose.msra.mxu0 0
        %1759 = vmatprep.subr.bf16.mxu0 0
        %1760 = vmatpush1.bf16.xpose.msra.mxu0 0
        %1761 = vmatprep.subr.bf16.mxu0 0
        %1762 = vmatpush1.bf16.xpose.msra.mxu0 0
        %1763 = vmatprep.subr.bf16.mxu0 0
        %1764 = vmatpush1.bf16.xpose.msra.mxu0 0
        %1765 = vmatprep.subr.bf16.mxu0 0
        %1766 = vmatpush1.bf16.xpose.msra.mxu0 0
        %1767 = vmatprep.subr.bf16.mxu0 0
        %1768 = vmatpush1.bf16.xpose.msra.mxu0 0
        %1769 = vmatprep.subr.bf16.mxu0 0
        %1770 = vmatpush1.bf16.xpose.msra.mxu0 0
        %1771 = vmatprep.subr.bf16.mxu0 0
        %1772 = vmatpush1.bf16.xpose.msra.mxu0 0
        %1773 = vmatprep.subr.bf16.mxu0 0
        %1774 = vmatpush1.bf16.xpose.msra.mxu0 0
        %1775 = vmatprep.subr.bf16.mxu0 0
        %1776 = vmatpush1.bf16.xpose.msra.mxu0 0
        %1777 = vmatprep.subr.bf16.mxu0 0
        %1778 = vmatpush1.bf16.xpose.msra.mxu0 0
        %1779 = vmatprep.subr.bf16.mxu0 0
        %1780 = vmatpush1.bf16.xpose.msra.mxu0 0
        %1781 = vmatprep.subr.bf16.mxu0 0
        %1782 = vmatpush1.bf16.xpose.msra.mxu0 0
        %1783 = vmatprep.subr.bf16.mxu0 0
        %1784 = vmatpush1.bf16.xpose.msra.mxu0 0
        %1785 = vmatprep.mubr.bf16.mxu0 0
        %1786 = vmatmul.mubr.bf16.gmra.mrb[0].mxu0 %v1748
        %v1787 = vpop.f32.mrb[0].mxu0
        %v1788 = vadd.f32 0.0, %v1787
        %v1789 = vpop.f32.mrb[0].mxu0
        %v1790 = vpop.f32.mrb[0].mxu0
        %v1791 = vpop.f32.mrb[0].mxu0
        %1792 = vdwg.mxu0
        %v1793 = vsel %vm1060, %v1788, -1000000.0
        %v1794 = vsel %vm364, %v1793, -inf
        %1795 = vmax.xlane.f32.xlu0 %v1794
        %v1796 = vpop.xlane.xlu0 %1795
        %v1797 = vsub.f32 %v1793, %v1796
        %v1798 = vmul.f32 %v1797, 1.442695
        %v1799 = vpow.pop %v1798
        %v1800 = vsel %vm364, %v1799, 0.0
        %1801 = vadd.xlane.f32.xlu0 %v1800
        %v1802 = vpop.xlane.xlu0 %1801
        %v1803 = vrcp.pop %v1802
        %v1804 = vmul.f32 %v1799, %v1803
        %v1805 = vpack.c.bf16 %v1804, %v1804
        %1806 = vrot.lane.b32.xlu0 %v1243, 104
        %v1807 = vpop.permute.xlu0 %1806
        %v1809 = vsel %vm364, %v1805, 0
        %v1812 = vsel %vm427, %v1807, 0
        %1814 = vmatprep.subr.bf16.mxu0 0
        %1815 = vmatpush1.bf16.msra.mxu0 %v1812
        %1816 = vmatprep.subr.bf16.mxu0 0
        %1817 = vmatpush1.bf16.msra.mxu0 0
        %1818 = vmatprep.subr.bf16.mxu0 0
        %1819 = vmatpush1.bf16.msra.mxu0 0
        %1820 = vmatprep.subr.bf16.mxu0 0
        %1821 = vmatpush1.bf16.msra.mxu0 0
        %1822 = vmatprep.subr.bf16.mxu0 0
        %1823 = vmatpush1.bf16.msra.mxu0 0
        %1824 = vmatprep.subr.bf16.mxu0 0
        %1825 = vmatpush1.bf16.msra.mxu0 0
        %1826 = vmatprep.subr.bf16.mxu0 0
        %1827 = vmatpush1.bf16.msra.mxu0 0
        %1828 = vmatprep.subr.bf16.mxu0 0
        %1829 = vmatpush1.bf16.msra.mxu0 0
        %1830 = vmatprep.subr.bf16.mxu0 0
        %1831 = vmatpush1.bf16.msra.mxu0 0
        %1832 = vmatprep.subr.bf16.mxu0 0
        %1833 = vmatpush1.bf16.msra.mxu0 0
        %1834 = vmatprep.subr.bf16.mxu0 0
        %1835 = vmatpush1.bf16.msra.mxu0 0
        %1836 = vmatprep.subr.bf16.mxu0 0
        %1837 = vmatpush1.bf16.msra.mxu0 0
        %1838 = vmatprep.subr.bf16.mxu0 0
        %1839 = vmatpush1.bf16.msra.mxu0 0
        %1840 = vmatprep.subr.bf16.mxu0 0
        %1841 = vmatpush1.bf16.msra.mxu0 0
        %1842 = vmatprep.subr.bf16.mxu0 0
        %1843 = vmatpush1.bf16.msra.mxu0 0
        %1844 = vmatprep.subr.bf16.mxu0 0
        %1845 = vmatpush1.bf16.msra.mxu0 0
        %1846 = vmatprep.mubr.bf16.mxu0 0
        %1847 = vmatmul.mubr.bf16.gmra.mrb[0].mxu0 %v1809
        %v1848 = vpop.f32.mrb[0].mxu0
        %v1849 = vadd.f32 0.0, %v1848
        %v1850 = vpop.f32.mrb[0].mxu0
        %v1851 = vpop.f32.mrb[0].mxu0
        %v1852 = vpop.f32.mrb[0].mxu0
        %1853 = vdwg.mxu0
        %v1854 = vpack.c.bf16 %v1849, %v1849
        %1855 = vrot.lane.b32.xlu0 %v1473, 104
        %v1856 = vpop.permute.xlu0 %1855
        %1857 = vrot.lane.b32.xlu0 %v1474, 104
        %v1858 = vpop.permute.xlu0 %1857
        %v1860 = vsel %vm364, %v1854, 0
        %v1863 = vsel %vm364, %v1856, 0
        %v1866 = vsel %vm364, %v1858, 0
        %1868 = vmatprep.subr.bf16.mxu0 0
        %1869 = vmatpush1.bf16.xpose.msra.mxu0 %v1863
        %1870 = vmatprep.subr.bf16.mxu0 0
        %1871 = vmatpush1.bf16.xpose.msra.mxu0 %v1866
        %1872 = vmatprep.subr.bf16.mxu0 0
        %1873 = vmatpush1.bf16.xpose.msra.mxu0 0
        %1874 = vmatprep.subr.bf16.mxu0 0
        %1875 = vmatpush1.bf16.xpose.msra.mxu0 0
        %1876 = vmatprep.subr.bf16.mxu0 0
        %1877 = vmatpush1.bf16.xpose.msra.mxu0 0
        %1878 = vmatprep.subr.bf16.mxu0 0
        %1879 = vmatpush1.bf16.xpose.msra.mxu0 0
        %1880 = vmatprep.subr.bf16.mxu0 0
        %1881 = vmatpush1.bf16.xpose.msra.mxu0 0
        %1882 = vmatprep.subr.bf16.mxu0 0
        %1883 = vmatpush1.bf16.xpose.msra.mxu0 0
        %1884 = vmatprep.subr.bf16.mxu0 0
        %1885 = vmatpush1.bf16.xpose.msra.mxu0 0
        %1886 = vmatprep.subr.bf16.mxu0 0
        %1887 = vmatpush1.bf16.xpose.msra.mxu0 0
        %1888 = vmatprep.subr.bf16.mxu0 0
        %1889 = vmatpush1.bf16.xpose.msra.mxu0 0
        %1890 = vmatprep.subr.bf16.mxu0 0
        %1891 = vmatpush1.bf16.xpose.msra.mxu0 0
        %1892 = vmatprep.subr.bf16.mxu0 0
        %1893 = vmatpush1.bf16.xpose.msra.mxu0 0
        %1894 = vmatprep.subr.bf16.mxu0 0
        %1895 = vmatpush1.bf16.xpose.msra.mxu0 0
        %1896 = vmatprep.subr.bf16.mxu0 0
        %1897 = vmatpush1.bf16.xpose.msra.mxu0 0
        %1898 = vmatprep.subr.bf16.mxu0 0
        %1899 = vmatpush1.bf16.xpose.msra.mxu0 0
        %1900 = vmatprep.mubr.bf16.mxu0 0
        %1901 = vmatmul.mubr.bf16.gmra.mrb[0].mxu0 %v1860
        %v1902 = vpop.f32.mrb[0].mxu0
        %v1903 = vadd.f32 0.0, %v1902
        %v1904 = vpop.f32.mrb[0].mxu0
        %v1905 = vpop.f32.mrb[0].mxu0
        %v1906 = vpop.f32.mrb[0].mxu0
        %1907 = vdwg.mxu0
        %v1908 = vadd.f32 %v1742, %v1903
        %v1909 = vadd.f32 %v1057, %v1908
        %v1910 = vld [vmem:[%s3 + $0x2] sm:$0x1]
        %v1911 = vld [vmem:[%s3 + $0x3] sm:$0x1]
        %v1912 = vsel %vm201, %v1909, 0.0
        %1913 = vadd.xlane.f32.xlu0 %v1912
        %v1914 = vpop.xlane.xlu0 %1913
        %v1915 = vmul.f32 %v1914, %v1037
        %v1916 = vsub.f32 %v1909, %v1915
        %v1917 = vmul.f32 %v1916, %v1916
        %v1918 = vsel %vm201, %v1917, 0.0
        %1919 = vadd.xlane.f32.xlu0 %v1918
        %v1920 = vpop.xlane.xlu0 %1919
        %v1921 = vmul.f32 %v1920, %v1037
        %v1922 = vadd.f32 %v1921, 1e-05
        %v1923 = vrsqrt.pop %v1922
        %v1924 = vmul.f32 %v1916, %v1923
        %v1925 = vlaneseq
        %v1926 = vshrl.u32 %v1925, 7
        %v1927 = vsub.s32 0, %v1926
        %v1928 = vrot.slane %v1910, %v1927
        %v1929 = vmul.f32 %v1924, %v1928
        %v1930 = vlaneseq
        %v1931 = vshrl.u32 %v1930, 7
        %v1932 = vsub.s32 0, %v1931
        %v1933 = vrot.slane %v1911, %v1932
        %v1934 = vadd.f32 %v1929, %v1933
        %v1935 = vpack.c.bf16 %v1934, %v1934
        %v1936 = vld [vmem:[%s2 + $0x80] sm:$0xf]
        %v1937 = vld [vmem:[%s2 + $0x84] sm:$0xf]
        %v1938 = vld [vmem:[%s2 + $0x88] sm:$0xf]
        %v1939 = vld [vmem:[%s2 + $0x8c] sm:$0xf]
        %v1940 = vld [vmem:[%s2 + $0x90] sm:$0xf]
        %v1941 = vld [vmem:[%s2 + $0x94] sm:$0xf]
        %v1942 = vld [vmem:[%s2 + $0x98] sm:$0xf]
        %v1943 = vld [vmem:[%s2 + $0x9c] sm:$0xf]
        %v1944 = vld [vmem:[%s3 + $0x7] sm:$0x1]
        %v1945 = vlaneseq
        %v1946 = vshrl.u32 %v1945, 7
        %v1947 = vsub.s32 0, %v1946
        %v1948 = vrot.slane %v1944, %v1947
        %v1957 = vunpack.c.l.b16 %v1936
        %v1958 = vunpack.c.l.b16 %v1937
        %v1959 = vunpack.c.l.b16 %v1938
        %v1960 = vunpack.c.l.b16 %v1939
        %v1961 = vunpack.c.l.b16 %v1940
        %v1962 = vunpack.c.l.b16 %v1941
        %v1963 = vunpack.c.l.b16 %v1942
        %v1964 = vunpack.c.l.b16 %v1943
        %v1965 = vpack.c.b16 %v1958, %v1957
        %v1966 = vpack.c.b16 %v1960, %v1959
        %v1967 = vpack.c.b16 %v1962, %v1961
        %v1968 = vpack.c.b16 %v1964, %v1963
        %v1970 = vsel %vm201, %v1935, 0
        %v1973 = vsel %vm201, %v1965, 0
        %v1976 = vsel %vm201, %v1966, 0
        %v1979 = vsel %vm201, %v1967, 0
        %v1982 = vsel %vm201, %v1968, 0
        %1984 = vmatprep.subr.bf16.mxu0 0
        %1985 = vmatpush1.bf16.xpose.msra.mxu0 %v1973
        %1986 = vmatprep.subr.bf16.mxu0 0
        %1987 = vmatpush1.bf16.xpose.msra.mxu0 %v1976
        %1988 = vmatprep.subr.bf16.mxu0 0
        %1989 = vmatpush1.bf16.xpose.msra.mxu0 %v1979
        %1990 = vmatprep.subr.bf16.mxu0 0
        %1991 = vmatpush1.bf16.xpose.msra.mxu0 %v1982
        %1992 = vmatprep.subr.bf16.mxu0 0
        %1993 = vmatpush1.bf16.xpose.msra.mxu0 0
        %1994 = vmatprep.subr.bf16.mxu0 0
        %1995 = vmatpush1.bf16.xpose.msra.mxu0 0
        %1996 = vmatprep.subr.bf16.mxu0 0
        %1997 = vmatpush1.bf16.xpose.msra.mxu0 0
        %1998 = vmatprep.subr.bf16.mxu0 0
        %1999 = vmatpush1.bf16.xpose.msra.mxu0 0
        %2000 = vmatprep.subr.bf16.mxu0 0
        %2001 = vmatpush1.bf16.xpose.msra.mxu0 0
        %2002 = vmatprep.subr.bf16.mxu0 0
        %2003 = vmatpush1.bf16.xpose.msra.mxu0 0
        %2004 = vmatprep.subr.bf16.mxu0 0
        %2005 = vmatpush1.bf16.xpose.msra.mxu0 0
        %2006 = vmatprep.subr.bf16.mxu0 0
        %2007 = vmatpush1.bf16.xpose.msra.mxu0 0
        %2008 = vmatprep.subr.bf16.mxu0 0
        %2009 = vmatpush1.bf16.xpose.msra.mxu0 0
        %2010 = vmatprep.subr.bf16.mxu0 0
        %2011 = vmatpush1.bf16.xpose.msra.mxu0 0
        %2012 = vmatprep.subr.bf16.mxu0 0
        %2013 = vmatpush1.bf16.xpose.msra.mxu0 0
        %2014 = vmatprep.subr.bf16.mxu0 0
        %2015 = vmatpush1.bf16.xpose.msra.mxu0 0
        %2016 = vmatprep.mubr.bf16.mxu0 0
        %2017 = vmatmul.mubr.bf16.gmra.mrb[0].mxu0 %v1970
        %v2018 = vpop.f32.mrb[0].mxu0
        %v2019 = vadd.f32 %v1948, %v2018
        %v2020 = vpop.f32.mrb[0].mxu0
        %v2021 = vpop.f32.mrb[0].mxu0
        %v2022 = vpop.f32.mrb[0].mxu0
        %2023 = vdwg.mxu0
        %v2024 = vmax.f32 %v2019, 0.0
        %v2025 = vpack.c.bf16 %v2024, %v2024
        %v2026 = vld [vmem:[%s2 + $0xa0] sm:$0xf]
        %v2027 = vld [vmem:[%s2 + $0xa4] sm:$0xf]
        %v2028 = vld [vmem:[%s2 + $0xa8] sm:$0xf]
        %v2029 = vld [vmem:[%s2 + $0xac] sm:$0xf]
        %v2030 = vld [vmem:[%s2 + $0xb0] sm:$0xf]
        %v2031 = vld [vmem:[%s2 + $0xb4] sm:$0xf]
        %v2032 = vld [vmem:[%s2 + $0xb8] sm:$0xf]
        %v2033 = vld [vmem:[%s2 + $0xbc] sm:$0xf]
        %v2034 = vld [vmem:[%s3 + $0x6] sm:$0x1]
        %v2035 = vlaneseq
        %v2036 = vshrl.u32 %v2035, 7
        %v2037 = vsub.s32 0, %v2036
        %v2038 = vrot.slane %v2034, %v2037
        %v2047 = vunpack.c.l.b16 %v2026
        %v2048 = vunpack.c.l.b16 %v2027
        %v2049 = vunpack.c.l.b16 %v2028
        %v2050 = vunpack.c.l.b16 %v2029
        %v2051 = vunpack.c.l.b16 %v2030
        %v2052 = vunpack.c.l.b16 %v2031
        %v2053 = vunpack.c.l.b16 %v2032
        %v2054 = vunpack.c.l.b16 %v2033
        %v2055 = vpack.c.b16 %v2048, %v2047
        %v2056 = vpack.c.b16 %v2050, %v2049
        %v2057 = vpack.c.b16 %v2052, %v2051
        %v2058 = vpack.c.b16 %v2054, %v2053
        %vm2063 = vcmask 523264
        %v2065 = vsel %vm2063, %v2025, 0
        %2067 = vmatprep.subr.bf16.mxu0 0
        %2068 = vmatpush1.bf16.msra.mxu0 %v2055
        %2069 = vmatprep.subr.bf16.mxu0 0
        %2070 = vmatpush1.bf16.msra.mxu0 %v2056
        %2071 = vmatprep.subr.bf16.mxu0 0
        %2072 = vmatpush1.bf16.msra.mxu0 %v2057
        %2073 = vmatprep.subr.bf16.mxu0 0
        %2074 = vmatpush1.bf16.msra.mxu0 %v2058
        %2075 = vmatprep.subr.bf16.mxu0 0
        %2076 = vmatpush1.bf16.msra.mxu0 0
        %2077 = vmatprep.subr.bf16.mxu0 0
        %2078 = vmatpush1.bf16.msra.mxu0 0
        %2079 = vmatprep.subr.bf16.mxu0 0
        %2080 = vmatpush1.bf16.msra.mxu0 0
        %2081 = vmatprep.subr.bf16.mxu0 0
        %2082 = vmatpush1.bf16.msra.mxu0 0
        %2083 = vmatprep.subr.bf16.mxu0 0
        %2084 = vmatpush1.bf16.msra.mxu0 0
        %2085 = vmatprep.subr.bf16.mxu0 0
        %2086 = vmatpush1.bf16.msra.mxu0 0
        %2087 = vmatprep.subr.bf16.mxu0 0
        %2088 = vmatpush1.bf16.msra.mxu0 0
        %2089 = vmatprep.subr.bf16.mxu0 0
        %2090 = vmatpush1.bf16.msra.mxu0 0
        %2091 = vmatprep.subr.bf16.mxu0 0
        %2092 = vmatpush1.bf16.msra.mxu0 0
        %2093 = vmatprep.subr.bf16.mxu0 0
        %2094 = vmatpush1.bf16.msra.mxu0 0
        %2095 = vmatprep.subr.bf16.mxu0 0
        %2096 = vmatpush1.bf16.msra.mxu0 0
        %2097 = vmatprep.subr.bf16.mxu0 0
        %2098 = vmatpush1.bf16.msra.mxu0 0
        %2099 = vmatprep.mubr.bf16.mxu0 0
        %2100 = vmatmul.mubr.bf16.gmra.mrb[0].mxu0 %v2065
        %v2101 = vpop.f32.mrb[0].mxu0
        %v2102 = vadd.f32 %v2038, %v2101
        %v2103 = vpop.f32.mrb[0].mxu0
        %v2104 = vpop.f32.mrb[0].mxu0
        %v2105 = vpop.f32.mrb[0].mxu0
        %2106 = vdwg.mxu0
        %v2107 = vadd.f32 %v1934, %v2102
        %v2108 = vld [vmem:[%s3 + $0x4] sm:$0x1]
        %v2109 = vld [vmem:[%s3 + $0x5] sm:$0x1]
        %v2110 = vsel %vm201, %v2107, 0.0
        %2111 = vadd.xlane.f32.xlu0 %v2110
        %v2112 = vpop.xlane.xlu0 %2111
        %v2113 = vmul.f32 %v2112, %v1037
        %v2114 = vsub.f32 %v2107, %v2113
        %v2115 = vmul.f32 %v2114, %v2114
        %v2116 = vsel %vm201, %v2115, 0.0
        %2117 = vadd.xlane.f32.xlu0 %v2116
        %v2118 = vpop.xlane.xlu0 %2117
        %v2119 = vmul.f32 %v2118, %v1037
        %v2120 = vadd.f32 %v2119, 1e-05
        %v2121 = vrsqrt.pop %v2120
        %v2122 = vmul.f32 %v2114, %v2121
        %v2123 = vlaneseq
        %v2124 = vshrl.u32 %v2123, 7
        %v2125 = vsub.s32 0, %v2124
        %v2126 = vrot.slane %v2108, %v2125
        %v2127 = vmul.f32 %v2122, %v2126
        %v2128 = vlaneseq
        %v2129 = vshrl.u32 %v2128, 7
        %v2130 = vsub.s32 0, %v2129
        %v2131 = vrot.slane %v2109, %v2130
        %v2132 = vadd.f32 %v2127, %v2131
        %2133 = vst.msk [vmem:[%s170] sm:$0xff] %vm201, %v2132
        %s2134 = sand.u32 %s100, 1
        %s2135 = scalar_lea.sflag [#allocation5], %s2134
        %s2136 = sand.u32 %s100, 1
        %s2137 = smul.addr %s2136, 8
        %s2138 = scalar_lea.vmem [#allocation4], %s2137
        // Predicated region
        $region33: #{decoder_block.1} parent=31 // pred_check
          %p2139 = pneg %p110
        $region34: #{decoder_block.1} parent=31 // pred_check_branch
          %2141 = sbr.rel (%p2139) target = $region36
        $region35: #{decoder_block.1} parent=31 // pred_region
          %s2143 = ssub.s32 128, 128
          %2144 = vsyncadd %s2135, %s2143
          %s2145 = smul.addr %s24, 128
          %s2146 = scalar_lea.hbm %s4, %s2145
          %s2148 = sshll.u32 %s2138, 4
          %s2149 = int_to_ptr.vmem [resolvable:$true] %s2148
          %2151 = dma.vmem_to_hbm [thread:$0]  %s2149, 128, %s2146, %s2135
        $region36: #{decoder_block.1} parent=31 // pred_fallthru
          _
      $region32: #{decoder_block.1} parent=5 // pred_fallthru
        _
      %p2152 = scmp.le.s32.totalorder 2, %s19
      // Predicated region
      $region37: #{decoder_block.1} parent=5 // pred_check
        %p2153 = pneg %p2152
      $region38: #{decoder_block.1} parent=5 // pred_check_branch
        %2155 = sbr.rel (%p2153) target = $region40
      $region39: #{decoder_block.1} parent=5 // pred_region
        %s2156 = ssub.s32 %s19, 2
        // Predicated region
        $region41: #{decoder_block.1} parent=39 // pred_check
          %p2157 = pneg %p116
        $region42: #{decoder_block.1} parent=39 // pred_check_branch
          %2159 = sbr.rel (%p2157) target = $region44
        $region43: #{decoder_block.1} parent=39 // pred_region
          %s2160 = sand.u32 %s101, 1
          %s2161 = scalar_lea.sflag [#allocation5], %s2160
          %s2162 = sand.u32 %s101, 1
          %s2163 = smul.addr %s2162, 8
          %s2164 = scalar_lea.vmem [#allocation4], %s2163
          %2165 = dma.done %s2161, 128
        $region44: #{decoder_block.1} parent=39 // pred_fallthru
          _
      $region40: #{decoder_block.1} parent=5 // pred_fallthru
        _
    $region6: #{decoder_block.1} parent=1 // loop_footer
      %s23 = sadd.s32 1, %s19
    $region7: #{decoder_block.1} parent=1 // loop_footer_branch
      %18 = sbr.rel target = $region3
    $region8: #{decoder_block.1} parent=1 // loop_exit
      _
    %2166 = vsyncpa [#allocation5], 1
    %s2167 = scalar_lea.sflag [#allocation5], 1
    %2168 = vsyncpa %s2167, 1

</llo_original>
